<compile_context>
chip_gen: v6e
topology: v6e:2x2x1
jax: 0.10.0
libtpu: 0.0.40
codegen_flags: <defaults>
</compile_context>

<pallas_src>
import functools

import jax
import jax.numpy as jnp
from jax.experimental import pallas as pl
from jax.experimental.pallas import tpu as pltpu


def decoder_step_kernel(
    # scalar prefetch
    nt_ref,            # (T,) int32 SMEM: number of active rows at step t
    # inputs
    att1_ref,          # (B, Pp, A) bf16  precomputed encoder attention projection
    enc_ref,           # (B, Pp, E) bf16  sorted (P-padded) encoder features
    emb_ref,           # (1, B, M)  bf16  embeddings at step t
    h0_ref, c0_ref,    # (B, D) f32  initial LSTM state (precomputed in wrapper)
    w_h_ref,           # (D, A+E)  bf16  [decoder_att | f_beta] fused, (in, out) layout
    b_h_ref,           # (1, A+E)  f32
    w_full_ref,        # (1, A)    f32
    w_gates_ref,       # (M+E+D, 4D) bf16  [W_ih_emb | W_ih_att | W_hh] fused
    b_gates_ref,       # (1, 4D)   f32   (= b_ih + b_hh)
    w_fc_ref,          # (D, V)    bf16
    b_fc_ref,          # (1, V)    f32
    # outputs
    pred_ref,          # (1, B, V)  f32
    alpha_ref,         # (1, B, Pp) f32
    # scratch (persist across grid steps)
    h_scr, c_scr,      # (B, D) f32
    *, num_pixels,
):
    t = pl.program_id(0)
    B, Pp, A = att1_ref.shape
    D = h_scr.shape[1]

    # ---- init_hidden_state result is just copied in at t == 0 ----
    @pl.when(t == 0)
    def _init():
        h_scr[...] = h0_ref[...]
        c_scr[...] = c0_ref[...]

    h = h_scr[...]                                       # (B, D) f32
    c = c_scr[...]
    h_bf = h.astype(jnp.bfloat16)

    # ---- fused decoder_att + f_beta projection of h -> (B, A+E) ----
    hproj = (jnp.dot(h_bf, w_h_ref[...], preferred_element_type=jnp.float32)
             + b_h_ref[...])
    att2 = hproj[:, :A]                                  # (B, A)
    gate = jax.nn.sigmoid(hproj[:, A:])                  # (B, E)

    # ---- attention scores: full_att(relu(att1 + att2)) as a lane reduction ----
    att_pre = jnp.maximum(att1_ref[...].astype(jnp.float32) + att2[:, None, :], 0.0)
    score = jnp.sum(att_pre * w_full_ref[...].reshape(1, 1, A), axis=-1)  # (B, Pp)
    # b_full omitted: a per-row constant before the softmax does not change alpha.
    if Pp > num_pixels:   # mask padded pixel positions
        pix = jax.lax.broadcasted_iota(jnp.int32, (B, Pp), 1)
        score = jnp.where(pix < num_pixels, score, -jnp.inf)
    score = score - jnp.max(score, axis=1, keepdims=True)
    e = jnp.exp(score)
    alpha = e / jnp.sum(e, axis=1, keepdims=True)        # softmax over pixels, f32

    # ---- awe = sum_p alpha[b,p] * enc[b,p,e] as a batched MXU matmul ----
    awe = jnp.einsum('bqp,bpe->bqe',
                     alpha[:, None, :].astype(jnp.bfloat16), enc_ref[...],
                     preferred_element_type=jnp.float32)[:, 0, :]        # (B, E)
    awe = gate * awe

    # ---- LSTMCell: one fused (B, M+E+D) x (M+E+D, 4D) gate matmul ----
    x = jnp.concatenate([emb_ref[0], awe.astype(jnp.bfloat16), h_bf], axis=1)
    gates = (jnp.dot(x, w_gates_ref[...], preferred_element_type=jnp.float32)
             + b_gates_ref[...])                          # (B, 4D)
    i_g = jax.nn.sigmoid(gates[:, 0:D])
    f_g = jax.nn.sigmoid(gates[:, D:2 * D])
    g_g = jnp.tanh(gates[:, 2 * D:3 * D])
    o_g = jax.nn.sigmoid(gates[:, 3 * D:4 * D])
    c_new = f_g * c + i_g * g_g
    h_new = o_g * jnp.tanh(c_new)

    # TODO(synk): nn.Dropout(p=0.5) treated as identity (eval mode); training-time
    # stochastic dropout mask is not implemented.
    preds = (jnp.dot(h_new.astype(jnp.bfloat16), w_fc_ref[...],
                     preferred_element_type=jnp.float32) + b_fc_ref[...])  # (B, V)

    # rows still decoding at step t (== torch batch_size_t truncation); rows are
    # sorted by decode length descending so the active set is exactly [0, nt).
    nt = nt_ref[t]
    valid = jax.lax.broadcasted_iota(jnp.int32, (B, 1), 0) < nt

    pred_ref[...] = jnp.where(valid, preds, 0.0)[None]    # (1, B, V)
    alpha_ref[...] = jnp.where(valid, alpha, 0.0)[None]   # (1, B, Pp)
    h_scr[...] = jnp.where(valid, h_new, h)               # freeze finished rows
    c_scr[...] = jnp.where(valid, c_new, c)


def init_params(key, attention_dim, embed_dim, decoder_dim, vocab_size, encoder_dim):
    A, M, D, V, E = attention_dim, embed_dim, decoder_dim, vocab_size, encoder_dim
    ks = jax.random.split(key, 20)
    u = lambda k, shape, s=0.1: jax.random.uniform(k, shape, jnp.float32, -s, s)
    p = {}
    p['embedding'] = u(ks[0], (V, M))                    # uniform_(-0.1, 0.1)
    p['w_enc_att'] = u(ks[1], (A, E)); p['b_enc_att'] = u(ks[2], (1, A))
    p['w_dec_att'] = u(ks[3], (A, D)); p['b_dec_att'] = u(ks[4], (1, A))
    p['w_full'] = u(ks[5], (1, A));    p['b_full'] = u(ks[6], (1, 1))
    p['w_init_h'] = u(ks[7], (D, E));  p['b_init_h'] = u(ks[8], (1, D))
    p['w_init_c'] = u(ks[9], (D, E));  p['b_init_c'] = u(ks[10], (1, D))
    p['w_fbeta'] = u(ks[11], (E, D));  p['b_fbeta'] = u(ks[12], (1, E))
    p['w_ih_e'] = u(ks[13], (4 * D, M))                  # LSTM W_ih[:, :M]
    p['w_ih_a'] = u(ks[14], (4 * D, E))                  # LSTM W_ih[:, M:]
    p['b_ih'] = u(ks[15], (1, 4 * D))
    p['w_hh'] = u(ks[16], (4 * D, D)); p['b_hh'] = u(ks[17], (1, 4 * D))
    p['w_fc'] = u(ks[18], (V, D))                        # uniform_(-0.1, 0.1)
    p['b_fc'] = jnp.zeros((1, V), jnp.float32)           # fill_(0)
    return p


def _round_up(x, m):
    return (x + m - 1) // m * m


def decoder_forward(params, encoder_out, encoded_captions, caption_lengths):
    """Mirrors DecoderWithAttention.forward.

    encoder_out: (B, H, W, E) float32
    encoded_captions: (B, Lcap) int32
    caption_lengths: (B, 1) int32
    returns (predictions, caps_sorted, decode_lengths, alphas, sort_ind)
    """
    B = encoder_out.shape[0]
    E = encoder_out.shape[-1]
    enc = encoder_out.reshape(B, -1, E).astype(jnp.float32)   # (B, P, E)
    P = enc.shape[1]
    V, M = params['embedding'].shape
    D = params['w_hh'].shape[1]
    A = params['w_enc_att'].shape[0]

    # sort by caption length, descending (torch.sort(descending=True));
    # ties may resolve differently than torch but outputs stay self-consistent.
    cap_len = caption_lengths.reshape(B)
    sort_ind = jnp.argsort(-cap_len)
    cap_sorted = cap_len[sort_ind]
    enc = enc[sort_ind]
    caps = encoded_captions[sort_ind]
    decode_lengths = (cap_sorted - 1).astype(jnp.int32)
    # Host sync; mirrors torch's (caption_lengths - 1).tolist() / max(...).
    T = int(jnp.max(decode_lengths))

    # ---- hoisted time-invariant precompute (plain XLA, runs once) ----
    # init_hidden_state: mean over the *real* pixels + the two init Linears.
    mean_enc = jnp.mean(enc, axis=1)                                    # (B, E)
    h0 = mean_enc @ params['w_init_h'].T + params['b_init_h']           # (B, D)
    c0 = mean_enc @ params['w_init_c'].T + params['b_init_c']           # (B, D)

    # pad num_pixels to a sublane multiple (lane-denser alpha stores, clean tiling)
    P_pad = _round_up(P, 8)
    if P_pad > P:
        enc = jnp.pad(enc, ((0, 0), (0, P_pad - P), (0, 0)))

    # encoder-side attention projection: independent of t and h -> compute once.
    att1 = jnp.einsum('bpe,ae->bpa', enc, params['w_enc_att']) + params['b_enc_att']

    enc_bf = enc.astype(jnp.bfloat16)
    att1_bf = att1.astype(jnp.bfloat16)

    # fused weights, (in, out) layout so the kernel never transposes on the MXU path
    w_h = jnp.concatenate([params['w_dec_att'], params['w_fbeta']],
                          axis=0).T.astype(jnp.bfloat16)                # (D, A+E)
    b_h = jnp.concatenate([params['b_dec_att'], params['b_fbeta']], axis=1)  # (1, A+E)
    w_gates = jnp.concatenate([params['w_ih_e'], params['w_ih_a'], params['w_hh']],
                              axis=1).T.astype(jnp.bfloat16)            # (M+E+D, 4D)
    b_gates = params['b_ih'] + params['b_hh']                           # (1, 4D)
    w_fc = params['w_fc'].T.astype(jnp.bfloat16)                        # (D, V)
    b_fc = params['b_fc']
    w_full = params['w_full']                                           # (1, A)
    # params['b_full'] is intentionally unused (cancels in the softmax).

    # embedding lookup (glue), time-major for the kernel
    emb = params['embedding'][caps][:, :T, :]                           # (B, T, M)
    emb_tm = jnp.transpose(emb, (1, 0, 2)).astype(jnp.bfloat16)         # (T, B, M)

    # per-step active-row count (rows sorted descending => active set == [0, nt))
    nt = jnp.sum(decode_lengths[None, :] > jnp.arange(T)[:, None],
                 axis=1).astype(jnp.int32)                              # (T,)

    def full_spec(arr):
        return pl.BlockSpec(arr.shape, lambda t, nt_ref, n=arr.ndim: (0,) * n)

    const_weights = [h0, c0, w_h, b_h, w_full, w_gates, b_gates, w_fc, b_fc]

    in_specs = ([full_spec(att1_bf), full_spec(enc_bf),
                 pl.BlockSpec((1, B, M), lambda t, nt_ref: (t, 0, 0))]
                + [full_spec(w) for w in const_weights])
    out_specs = [pl.BlockSpec((1, B, V), lambda t, nt_ref: (t, 0, 0)),
                 pl.BlockSpec((1, B, P_pad), lambda t, nt_ref: (t, 0, 0))]

    kernel = functools.partial(decoder_step_kernel, num_pixels=P)

    preds_tm, alphas_tm = pl.pallas_call(
        kernel,
        out_shape=(jax.ShapeDtypeStruct((T, B, V), jnp.float32),
                   jax.ShapeDtypeStruct((T, B, P_pad), jnp.float32)),
        grid_spec=pltpu.PrefetchScalarGridSpec(
            num_scalar_prefetch=1,                         # nt -> SMEM
            grid=(T,),
            in_specs=in_specs,
            out_specs=out_specs,
            scratch_shapes=[pltpu.VMEM((B, D), jnp.float32),   # h
                            pltpu.VMEM((B, D), jnp.float32)],  # c
        ),
        compiler_params=pltpu.CompilerParams(
            dimension_semantics=("arbitrary",),            # sequential recurrence
            vmem_limit_bytes=64 * 1024 * 1024),
    )(nt, att1_bf, enc_bf, emb_tm, *const_weights)

    predictions = jnp.transpose(preds_tm, (1, 0, 2))        # (B, T, V)
    alphas = jnp.transpose(alphas_tm, (1, 0, 2))[:, :, :P]  # (B, T, P)
    decode_lengths_list = [int(x) for x in decode_lengths]  # mirrors .tolist()
    return predictions, caps, decode_lengths_list, alphas, sort_ind


if __name__ == "__main__":
    key = jax.random.PRNGKey(0)
    B, IMG, ENC_DIM = 4, 4, 32          # encoder: (B, 4, 4, 32) -> 16 pixels
    ATT_DIM, EMB_DIM, DEC_DIM, VOCAB = 32, 32, 32, 64
    MAX_CAP_LEN = 8

    k_enc, k_cap, k_len, k_par = jax.random.split(key, 4)
    encoder_out = jax.random.normal(k_enc, (B, IMG, IMG, ENC_DIM), jnp.float32)
    encoded_captions = jax.random.randint(k_cap, (B, MAX_CAP_LEN), 0, VOCAB, jnp.int32)
    caption_lengths = jax.random.randint(k_len, (B, 1), 3, MAX_CAP_LEN + 1, jnp.int32)

    params = init_params(k_par, ATT_DIM, EMB_DIM, DEC_DIM, VOCAB, ENC_DIM)

    preds, caps_sorted, dec_lens, alphas, sort_ind = decoder_forward(
        params, encoder_out, encoded_captions, caption_lengths)
    jax.block_until_ready((preds, alphas, caps_sorted, sort_ind))

    assert preds.shape == (B, max(dec_lens), VOCAB)
    assert alphas.shape == (B, max(dec_lens), IMG * IMG)
    print("KERNEL_OK")
</pallas_src>

<mosaic_0001>
module attributes {stable_mosaic.version = 11 : i64} {
  func.func @decoder_step_kernel(%arg0: i32, %arg1: memref<7xi32, #tpu.memory_space<smem>>, %arg2: memref<4x16x32xbf16, #tpu.memory_space<vmem>>, %arg3: memref<4x16x32xbf16, #tpu.memory_space<vmem>>, %arg4: memref<1x4x32xbf16, #tpu.memory_space<vmem>>, %arg5: memref<4x32xf32, #tpu.memory_space<vmem>>, %arg6: memref<4x32xf32, #tpu.memory_space<vmem>>, %arg7: memref<32x64xbf16, #tpu.memory_space<vmem>>, %arg8: memref<1x64xf32, #tpu.memory_space<vmem>>, %arg9: memref<1x32xf32, #tpu.memory_space<vmem>>, %arg10: memref<96x128xbf16, #tpu.memory_space<vmem>>, %arg11: memref<1x128xf32, #tpu.memory_space<vmem>>, %arg12: memref<32x64xbf16, #tpu.memory_space<vmem>>, %arg13: memref<1x64xf32, #tpu.memory_space<vmem>>, %arg14: memref<1x4x64xf32, #tpu.memory_space<vmem>>, %arg15: memref<1x4x16xf32, #tpu.memory_space<vmem>>, %arg16: memref<4x32xf32, #tpu.memory_space<vmem>>, %arg17: memref<4x32xf32, #tpu.memory_space<vmem>>) attributes {dimension_semantics = [#tpu.dimension_semantics<arbitrary>], iteration_bounds = array<i64: 7>, scalar_prefetch = 1 : i64, scratch_operands = 2 : i64, tpu.core_type = #tpu.core_type<tc>, window_params = [{pipeline_mode = #tpu.pipeline_mode<synchronous>, transform_indices = @transform_0, window_bounds = array<i64: 4, 16, 32>}, {pipeline_mode = #tpu.pipeline_mode<synchronous>, transform_indices = @transform_1, window_bounds = array<i64: 4, 16, 32>}, {transform_indices = @transform_2, window_bounds = array<i64: 1, 4, 32>}, {pipeline_mode = #tpu.pipeline_mode<synchronous>, transform_indices = @transform_3, window_bounds = array<i64: 4, 32>}, {pipeline_mode = #tpu.pipeline_mode<synchronous>, transform_indices = @transform_4, window_bounds = array<i64: 4, 32>}, {pipeline_mode = #tpu.pipeline_mode<synchronous>, transform_indices = @transform_5, window_bounds = array<i64: 32, 64>}, {pipeline_mode = #tpu.pipeline_mode<synchronous>, transform_indices = @transform_6, window_bounds = array<i64: 1, 64>}, {pipeline_mode = #tpu.pipeline_mode<synchronous>, transform_indices = @transform_7, window_bounds = array<i64: 1, 32>}, {pipeline_mode = #tpu.pipeline_mode<synchronous>, transform_indices = @transform_8, window_bounds = array<i64: 96, 128>}, {pipeline_mode = #tpu.pipeline_mode<synchronous>, transform_indices = @transform_9, window_bounds = array<i64: 1, 128>}, {pipeline_mode = #tpu.pipeline_mode<synchronous>, transform_indices = @transform_10, window_bounds = array<i64: 32, 64>}, {pipeline_mode = #tpu.pipeline_mode<synchronous>, transform_indices = @transform_11, window_bounds = array<i64: 1, 64>}, {transform_indices = @transform_12, window_bounds = array<i64: 1, 4, 64>}, {transform_indices = @transform_13, window_bounds = array<i64: 1, 4, 16>}]} {
    %c0_i32 = arith.constant 0 : i32
    %0 = arith.cmpi eq, %arg0, %c0_i32 : i32
    %1 = arith.extui %0 : i1 to i32
    %c0_i32_0 = arith.constant 0 : i32
    %2 = arith.cmpi ne, %1, %c0_i32_0 : i32
    scf.if %2 {
      %c0_50 = arith.constant 0 : index
      %c0_51 = arith.constant 0 : index
      %110 = vector.load %arg5[%c0_50, %c0_51] : memref<4x32xf32, #tpu.memory_space<vmem>>, vector<4x32xf32>
      %c0_52 = arith.constant 0 : index
      %c0_53 = arith.constant 0 : index
      %111 = vector.load %arg16[%c0_52, %c0_53] : memref<4x32xf32, #tpu.memory_space<vmem>>, vector<4x32xf32>
      tpu.vector_store %arg16[%c0_52, %c0_53], %110 {strides = array<i32>} : memref<4x32xf32, #tpu.memory_space<vmem>>, vector<4x32xf32>,
      %c0_54 = arith.constant 0 : index
      %c0_55 = arith.constant 0 : index
      %112 = vector.load %arg6[%c0_54, %c0_55] : memref<4x32xf32, #tpu.memory_space<vmem>>, vector<4x32xf32>
      %c0_56 = arith.constant 0 : index
      %c0_57 = arith.constant 0 : index
      %113 = vector.load %arg17[%c0_56, %c0_57] : memref<4x32xf32, #tpu.memory_space<vmem>>, vector<4x32xf32>
      tpu.vector_store %arg17[%c0_56, %c0_57], %112 {strides = array<i32>} : memref<4x32xf32, #tpu.memory_space<vmem>>, vector<4x32xf32>,
    } else {
    }
    %c0 = arith.constant 0 : index
    %c0_1 = arith.constant 0 : index
    %3 = vector.load %arg16[%c0, %c0_1] : memref<4x32xf32, #tpu.memory_space<vmem>>, vector<4x32xf32>
    %c0_2 = arith.constant 0 : index
    %c0_3 = arith.constant 0 : index
    %4 = vector.load %arg17[%c0_2, %c0_3] : memref<4x32xf32, #tpu.memory_space<vmem>>, vector<4x32xf32>
    %5 = arith.truncf %3 : vector<4x32xf32> to vector<4x32xbf16>
    %c0_4 = arith.constant 0 : index
    %c0_5 = arith.constant 0 : index
    %6 = vector.load %arg7[%c0_4, %c0_5] : memref<32x64xbf16, #tpu.memory_space<vmem>>, vector<32x64xbf16>
    %cst = arith.constant dense<0.000000e+00> : vector<4x64xf32>
    %7 = tpu.matmul %5, %6, %cst {dimension_numbers = #tpu.dot_dimension_numbers<[1], [0], [0], [1], [0, 0, 1, 1], [], []>} : vector<4x32xbf16>, vector<32x64xbf16>, vector<4x64xf32> -> vector<4x64xf32>
    %c0_6 = arith.constant 0 : index
    %c0_7 = arith.constant 0 : index
    %8 = vector.load %arg8[%c0_6, %c0_7] : memref<1x64xf32, #tpu.memory_space<vmem>>, vector<1x64xf32>
    %9 = vector.broadcast %8 : vector<1x64xf32> to vector<4x64xf32>
    %10 = arith.addf %7, %9 : vector<4x64xf32>
    %11 = vector.extract_strided_slice %10 {offsets = [0, 0], sizes = [4, 32], strides = [1, 1]} : vector<4x64xf32> to vector<4x32xf32>
    %12 = vector.extract_strided_slice %10 {offsets = [0, 32], sizes = [4, 32], strides = [1, 1]} : vector<4x64xf32> to vector<4x32xf32>
    %13 = arith.negf %12 : vector<4x32xf32>
    %14 = math.exp %13 : vector<4x32xf32>
    %cst_8 = arith.constant 1.000000e+00 : f32
    %15 = vector.broadcast %cst_8 : f32 to vector<4x32xf32>
    %16 = arith.addf %15, %14 : vector<4x32xf32>
    %17 = arith.divf %15, %16 : vector<4x32xf32>
    %c0_9 = arith.constant 0 : index
    %c0_10 = arith.constant 0 : index
    %c0_11 = arith.constant 0 : index
    %18 = vector.load %arg2[%c0_9, %c0_10, %c0_11] : memref<4x16x32xbf16, #tpu.memory_space<vmem>>, vector<4x16x32xbf16>
    %19 = arith.extf %18 : vector<4x16x32xbf16> to vector<4x16x32xf32>
    %20 = vector.shape_cast %11 : vector<4x32xf32> to vector<4x1x32xf32>
    %21 = vector.broadcast %20 : vector<4x1x32xf32> to vector<4x16x32xf32>
    %22 = arith.addf %19, %21 : vector<4x16x32xf32>
    %cst_12 = arith.constant 0.000000e+00 : f32
    %23 = vector.broadcast %cst_12 : f32 to vector<4x16x32xf32>
    %24 = arith.maximumf %22, %23 : vector<4x16x32xf32>
    %c0_13 = arith.constant 0 : index
    %c0_14 = arith.constant 0 : index
    %25 = vector.load %arg9[%c0_13, %c0_14] : memref<1x32xf32, #tpu.memory_space<vmem>>, vector<1x32xf32>
    %26 = vector.shape_cast %25 : vector<1x32xf32> to vector<1x1x32xf32>
    %27 = vector.broadcast %26 : vector<1x1x32xf32> to vector<4x16x32xf32>
    %28 = arith.mulf %24, %27 : vector<4x16x32xf32>
    %cst_15 = arith.constant dense<0.000000e+00> : vector<4x16xf32>
    %29 = vector.multi_reduction <add>, %28, %cst_15 [2] : vector<4x16x32xf32> to vector<4x16xf32>
    %cst_16 = arith.constant dense<0xFF800000> : vector<4xf32>
    %30 = vector.multi_reduction <maximumf>, %29, %cst_16 [1] : vector<4x16xf32> to vector<4xf32>
    %31 = vector.shape_cast %30 : vector<4xf32> to vector<4x1xf32>
    %32 = vector.broadcast %31 : vector<4x1xf32> to vector<4x16xf32>
    %33 = arith.subf %29, %32 : vector<4x16xf32>
    %34 = math.exp %33 : vector<4x16xf32>
    %cst_17 = arith.constant dense<0.000000e+00> : vector<4xf32>
    %35 = vector.multi_reduction <add>, %34, %cst_17 [1] : vector<4x16xf32> to vector<4xf32>
    %36 = vector.shape_cast %35 : vector<4xf32> to vector<4x1xf32>
    %37 = vector.broadcast %36 : vector<4x1xf32> to vector<4x16xf32>
    %38 = arith.divf %34, %37 : vector<4x16xf32>
    %39 = vector.shape_cast %38 : vector<4x16xf32> to vector<4x1x16xf32>
    %40 = arith.truncf %39 : vector<4x1x16xf32> to vector<4x1x16xbf16>
    %c0_18 = arith.constant 0 : index
    %c0_19 = arith.constant 0 : index
    %c0_20 = arith.constant 0 : index
    %41 = vector.load %arg3[%c0_18, %c0_19, %c0_20] : memref<4x16x32xbf16, #tpu.memory_space<vmem>>, vector<4x16x32xbf16>
    "tpu.trace_start"() <{level = 10 : i32, message = "bqp,bpe->bqe"}> : () -> ()
    %cst_21 = arith.constant dense<0.000000e+00> : vector<4x1x32xf32>
    %42 = tpu.matmul %40, %41, %cst_21 {dimension_numbers = #tpu.dot_dimension_numbers<[2], [1], [1], [2], [0, 0, 0, 1, 1, 2], [0], [0]>} : vector<4x1x16xbf16>, vector<4x16x32xbf16>, vector<4x1x32xf32> -> vector<4x1x32xf32>
    "tpu.trace_stop"() : () -> ()
    %43 = vector.shape_cast %42 : vector<4x1x32xf32> to vector<4x32xf32>
    %44 = arith.mulf %17, %43 : vector<4x32xf32>
    %c0_22 = arith.constant 0 : index
    %c0_23 = arith.constant 0 : index
    %c0_24 = arith.constant 0 : index
    %45 = vector.load %arg4[%c0_22, %c0_23, %c0_24] : memref<1x4x32xbf16, #tpu.memory_space<vmem>>, vector<1x4x32xbf16>
    %46 = vector.shape_cast %45 : vector<1x4x32xbf16> to vector<4x32xbf16>
    %47 = arith.truncf %44 : vector<4x32xf32> to vector<4x32xbf16>
    %48 = tpu.concatenate %46, %47, %5 in 1 : vector<4x32xbf16>, vector<4x32xbf16>, vector<4x32xbf16> -> vector<4x96xbf16>
    %c0_25 = arith.constant 0 : index
    %c0_26 = arith.constant 0 : index
    %49 = vector.load %arg10[%c0_25, %c0_26] : memref<96x128xbf16, #tpu.memory_space<vmem>>, vector<96x128xbf16>
    %cst_27 = arith.constant dense<0.000000e+00> : vector<4x128xf32>
    %50 = tpu.matmul %48, %49, %cst_27 {dimension_numbers = #tpu.dot_dimension_numbers<[1], [0], [0], [1], [0, 0, 1, 1], [], []>} : vector<4x96xbf16>, vector<96x128xbf16>, vector<4x128xf32> -> vector<4x128xf32>
    %c0_28 = arith.constant 0 : index
    %c0_29 = arith.constant 0 : index
    %51 = vector.load %arg11[%c0_28, %c0_29] : memref<1x128xf32, #tpu.memory_space<vmem>>, vector<1x128xf32>
    %52 = vector.broadcast %51 : vector<1x128xf32> to vector<4x128xf32>
    %53 = arith.addf %50, %52 : vector<4x128xf32>
    %54 = vector.extract_strided_slice %53 {offsets = [0, 0], sizes = [4, 32], strides = [1, 1]} : vector<4x128xf32> to vector<4x32xf32>
    %55 = arith.negf %54 : vector<4x32xf32>
    %56 = math.exp %55 : vector<4x32xf32>
    %cst_30 = arith.constant 1.000000e+00 : f32
    %57 = vector.broadcast %cst_30 : f32 to vector<4x32xf32>
    %58 = arith.addf %57, %56 : vector<4x32xf32>
    %59 = arith.divf %57, %58 : vector<4x32xf32>
    %60 = vector.extract_strided_slice %53 {offsets = [0, 32], sizes = [4, 32], strides = [1, 1]} : vector<4x128xf32> to vector<4x32xf32>
    %61 = arith.negf %60 : vector<4x32xf32>
    %62 = math.exp %61 : vector<4x32xf32>
    %cst_31 = arith.constant 1.000000e+00 : f32
    %63 = vector.broadcast %cst_31 : f32 to vector<4x32xf32>
    %64 = arith.addf %63, %62 : vector<4x32xf32>
    %65 = arith.divf %63, %64 : vector<4x32xf32>
    %66 = vector.extract_strided_slice %53 {offsets = [0, 64], sizes = [4, 32], strides = [1, 1]} : vector<4x128xf32> to vector<4x32xf32>
    %67 = math.tanh %66 : vector<4x32xf32>
    %68 = vector.extract_strided_slice %53 {offsets = [0, 96], sizes = [4, 32], strides = [1, 1]} : vector<4x128xf32> to vector<4x32xf32>
    %69 = arith.negf %68 : vector<4x32xf32>
    %70 = math.exp %69 : vector<4x32xf32>
    %cst_32 = arith.constant 1.000000e+00 : f32
    %71 = vector.broadcast %cst_32 : f32 to vector<4x32xf32>
    %72 = arith.addf %71, %70 : vector<4x32xf32>
    %73 = arith.divf %71, %72 : vector<4x32xf32>
    %74 = arith.mulf %65, %4 : vector<4x32xf32>
    %75 = arith.mulf %59, %67 : vector<4x32xf32>
    %76 = arith.addf %74, %75 : vector<4x32xf32>
    %77 = math.tanh %76 : vector<4x32xf32>
    %78 = arith.mulf %73, %77 : vector<4x32xf32>
    %79 = arith.truncf %78 : vector<4x32xf32> to vector<4x32xbf16>
    %c0_33 = arith.constant 0 : index
    %c0_34 = arith.constant 0 : index
    %80 = vector.load %arg12[%c0_33, %c0_34] : memref<32x64xbf16, #tpu.memory_space<vmem>>, vector<32x64xbf16>
    %cst_35 = arith.constant dense<0.000000e+00> : vector<4x64xf32>
    %81 = tpu.matmul %79, %80, %cst_35 {dimension_numbers = #tpu.dot_dimension_numbers<[1], [0], [0], [1], [0, 0, 1, 1], [], []>} : vector<4x32xbf16>, vector<32x64xbf16>, vector<4x64xf32> -> vector<4x64xf32>
    %c0_36 = arith.constant 0 : index
    %c0_37 = arith.constant 0 : index
    %82 = vector.load %arg13[%c0_36, %c0_37] : memref<1x64xf32, #tpu.memory_space<vmem>>, vector<1x64xf32>
    %83 = vector.broadcast %82 : vector<1x64xf32> to vector<4x64xf32>
    %84 = arith.addf %81, %83 : vector<4x64xf32>
    %85 = arith.index_cast %arg0 : i32 to index
    %86 = memref.load %arg1[%85] : memref<7xi32, #tpu.memory_space<smem>>
    %87 = tpu.iota {dimensions = array<i32: 0>} : vector<4x1xi32>
    %88 = vector.broadcast %86 : i32 to vector<4x1xi32>
    %89 = arith.cmpi slt, %87, %88 : vector<4x1xi32>
    %cst_38 = arith.constant 0.000000e+00 : f32
    %90 = vector.shape_cast %89 : vector<4x1xi1> to vector<4x1xi1>
    %91 = vector.broadcast %90 : vector<4x1xi1> to vector<4x64xi1>
    %92 = vector.broadcast %cst_38 : f32 to vector<4x64xf32>
    %93 = arith.select %91, %84, %92 : vector<4x64xi1>, vector<4x64xf32>
    %94 = vector.shape_cast %93 : vector<4x64xf32> to vector<1x4x64xf32>
    %c0_39 = arith.constant 0 : index
    %c0_40 = arith.constant 0 : index
    %c0_41 = arith.constant 0 : index
    %95 = vector.load %arg14[%c0_39, %c0_40, %c0_41] : memref<1x4x64xf32, #tpu.memory_space<vmem>>, vector<1x4x64xf32>
    tpu.vector_store %arg14[%c0_39, %c0_40, %c0_41], %94 {strides = array<i32>} : memref<1x4x64xf32, #tpu.memory_space<vmem>>, vector<1x4x64xf32>,
    %cst_42 = arith.constant 0.000000e+00 : f32
    %96 = vector.shape_cast %89 : vector<4x1xi1> to vector<4x1xi1>
    %97 = vector.broadcast %96 : vector<4x1xi1> to vector<4x16xi1>
    %98 = vector.broadcast %cst_42 : f32 to vector<4x16xf32>
    %99 = arith.select %97, %38, %98 : vector<4x16xi1>, vector<4x16xf32>
    %100 = vector.shape_cast %99 : vector<4x16xf32> to vector<1x4x16xf32>
    %c0_43 = arith.constant 0 : index
    %c0_44 = arith.constant 0 : index
    %c0_45 = arith.constant 0 : index
    %101 = vector.load %arg15[%c0_43, %c0_44, %c0_45] : memref<1x4x16xf32, #tpu.memory_space<vmem>>, vector<1x4x16xf32>
    tpu.vector_store %arg15[%c0_43, %c0_44, %c0_45], %100 {strides = array<i32>} : memref<1x4x16xf32, #tpu.memory_space<vmem>>, vector<1x4x16xf32>,
    %102 = vector.shape_cast %89 : vector<4x1xi1> to vector<4x1xi1>
    %103 = vector.broadcast %102 : vector<4x1xi1> to vector<4x32xi1>
    %104 = arith.select %103, %78, %3 : vector<4x32xi1>, vector<4x32xf32>
    %c0_46 = arith.constant 0 : index
    %c0_47 = arith.constant 0 : index
    %105 = vector.load %arg16[%c0_46, %c0_47] : memref<4x32xf32, #tpu.memory_space<vmem>>, vector<4x32xf32>
    tpu.vector_store %arg16[%c0_46, %c0_47], %104 {strides = array<i32>} : memref<4x32xf32, #tpu.memory_space<vmem>>, vector<4x32xf32>,
    %106 = vector.shape_cast %89 : vector<4x1xi1> to vector<4x1xi1>
    %107 = vector.broadcast %106 : vector<4x1xi1> to vector<4x32xi1>
    %108 = arith.select %107, %76, %4 : vector<4x32xi1>, vector<4x32xf32>
    %c0_48 = arith.constant 0 : index
    %c0_49 = arith.constant 0 : index
    %109 = vector.load %arg17[%c0_48, %c0_49] : memref<4x32xf32, #tpu.memory_space<vmem>>, vector<4x32xf32>
    tpu.vector_store %arg17[%c0_48, %c0_49], %108 {strides = array<i32>} : memref<4x32xf32, #tpu.memory_space<vmem>>, vector<4x32xf32>,
    return
  }
  func.func @transform_0(%arg0: i32, %arg1: memref<7xi32, #tpu.memory_space<smem>>) -> (i32, i32, i32) {
    %c0_i32 = arith.constant 0 : i32
    %c0_i32_0 = arith.constant 0 : i32
    %c0_i32_1 = arith.constant 0 : i32
    %c0_i32_2 = arith.constant 0 : i32
    return %c0_i32, %c0_i32_0, %c0_i32_1 : i32, i32, i32
  }
  func.func @transform_1(%arg0: i32, %arg1: memref<7xi32, #tpu.memory_space<smem>>) -> (i32, i32, i32) {
    %c0_i32 = arith.constant 0 : i32
    %c0_i32_0 = arith.constant 0 : i32
    %c0_i32_1 = arith.constant 0 : i32
    %c0_i32_2 = arith.constant 0 : i32
    return %c0_i32, %c0_i32_0, %c0_i32_1 : i32, i32, i32
  }
  func.func @transform_2(%arg0: i32, %arg1: memref<7xi32, #tpu.memory_space<smem>>) -> (i32, i32, i32) {
    %c0_i32 = arith.constant 0 : i32
    %c0_i32_0 = arith.constant 0 : i32
    %c0_i32_1 = arith.constant 0 : i32
    return %arg0, %c0_i32, %c0_i32_0 : i32, i32, i32
  }
  func.func @transform_3(%arg0: i32, %arg1: memref<7xi32, #tpu.memory_space<smem>>) -> (i32, i32) {
    %c0_i32 = arith.constant 0 : i32
    %c0_i32_0 = arith.constant 0 : i32
    %c0_i32_1 = arith.constant 0 : i32
    return %c0_i32, %c0_i32_0 : i32, i32
  }
  func.func @transform_4(%arg0: i32, %arg1: memref<7xi32, #tpu.memory_space<smem>>) -> (i32, i32) {
    %c0_i32 = arith.constant 0 : i32
    %c0_i32_0 = arith.constant 0 : i32
    %c0_i32_1 = arith.constant 0 : i32
    return %c0_i32, %c0_i32_0 : i32, i32
  }
  func.func @transform_5(%arg0: i32, %arg1: memref<7xi32, #tpu.memory_space<smem>>) -> (i32, i32) {
    %c0_i32 = arith.constant 0 : i32
    %c0_i32_0 = arith.constant 0 : i32
    %c0_i32_1 = arith.constant 0 : i32
    return %c0_i32, %c0_i32_0 : i32, i32
  }
  func.func @transform_6(%arg0: i32, %arg1: memref<7xi32, #tpu.memory_space<smem>>) -> (i32, i32) {
    %c0_i32 = arith.constant 0 : i32
    %c0_i32_0 = arith.constant 0 : i32
    %c0_i32_1 = arith.constant 0 : i32
    return %c0_i32, %c0_i32_0 : i32, i32
  }
  func.func @transform_7(%arg0: i32, %arg1: memref<7xi32, #tpu.memory_space<smem>>) -> (i32, i32) {
    %c0_i32 = arith.constant 0 : i32
    %c0_i32_0 = arith.constant 0 : i32
    %c0_i32_1 = arith.constant 0 : i32
    return %c0_i32, %c0_i32_0 : i32, i32
  }
  func.func @transform_8(%arg0: i32, %arg1: memref<7xi32, #tpu.memory_space<smem>>) -> (i32, i32) {
    %c0_i32 = arith.constant 0 : i32
    %c0_i32_0 = arith.constant 0 : i32
    %c0_i32_1 = arith.constant 0 : i32
    return %c0_i32, %c0_i32_0 : i32, i32
  }
  func.func @transform_9(%arg0: i32, %arg1: memref<7xi32, #tpu.memory_space<smem>>) -> (i32, i32) {
    %c0_i32 = arith.constant 0 : i32
    %c0_i32_0 = arith.constant 0 : i32
    %c0_i32_1 = arith.constant 0 : i32
    return %c0_i32, %c0_i32_0 : i32, i32
  }
  func.func @transform_10(%arg0: i32, %arg1: memref<7xi32, #tpu.memory_space<smem>>) -> (i32, i32) {
    %c0_i32 = arith.constant 0 : i32
    %c0_i32_0 = arith.constant 0 : i32
    %c0_i32_1 = arith.constant 0 : i32
    return %c0_i32, %c0_i32_0 : i32, i32
  }
  func.func @transform_11(%arg0: i32, %arg1: memref<7xi32, #tpu.memory_space<smem>>) -> (i32, i32) {
    %c0_i32 = arith.constant 0 : i32
    %c0_i32_0 = arith.constant 0 : i32
    %c0_i32_1 = arith.constant 0 : i32
    return %c0_i32, %c0_i32_0 : i32, i32
  }
  func.func @transform_12(%arg0: i32, %arg1: memref<7xi32, #tpu.memory_space<smem>>) -> (i32, i32, i32) {
    %c0_i32 = arith.constant 0 : i32
    %c0_i32_0 = arith.constant 0 : i32
    %c0_i32_1 = arith.constant 0 : i32
    return %arg0, %c0_i32, %c0_i32_0 : i32, i32, i32
  }
  func.func @transform_13(%arg0: i32, %arg1: memref<7xi32, #tpu.memory_space<smem>>) -> (i32, i32, i32) {
    %c0_i32 = arith.constant 0 : i32
    %c0_i32_0 = arith.constant 0 : i32
    %c0_i32_1 = arith.constant 0 : i32
    return %arg0, %c0_i32, %c0_i32_0 : i32, i32, i32
  }
}

</mosaic_0001>

<llo_original>
// kernel: tpu_custom_call.1
$region0: #{tpu_custom_call.1}
  #allocation0 [shape = 'u32[]', space=smem, size = 0x4, offset = 0x4, fixed_abs, tag = 'smem constant byte address 0x4 - core index']
  #allocation1 [shape = 'u32[144,128]{1,0:T(1,128)}', space=vmem, size = 0x12000, scoped, tag = 'internal scratch']
  #allocation2 [shape = 'f32[4,32]{1,0:T(4,128)}', space=vmem, size = 0x800, scoped, tag = 'scratch operand']
  #allocation3 [shape = 'f32[4,32]{1,0:T(4,128)}', space=vmem, size = 0x800, scoped, tag = 'scratch operand']
  #allocation4 [shape = 's32[1]{0}', space=sflag, size = 0x4, scoped, tag = 'scoped memory for tpu_custom_call.1']
  #allocation5 [shape = 'u8[512]{0}', space=smem, size = 0x200, scoped, tag = 'prefetched SMEM operand 0']
  %s0 = inlined_call_operand.hbm [shape: s32[7], index: 0, kind: input, shape index: {}]
  %s1 = inlined_call_operand.hbm [shape: bf16[4,16,32], index: 1, kind: input, shape index: {}]
  %s2 = inlined_call_operand.hbm [shape: bf16[4,16,32], index: 2, kind: input, shape index: {}]
  %s3 = inlined_call_operand.hbm [shape: bf16[7,4,32], index: 3, kind: input, shape index: {}]
  %s4 = inlined_call_operand.vmem [shape: f32[4,32], index: 4, kind: input, shape index: {}]
  %s5 = inlined_call_operand.hbm [shape: f32[4,32], index: 5, kind: input, shape index: {}]
  %s6 = inlined_call_operand.hbm [shape: bf16[32,64], index: 6, kind: input, shape index: {}]
  %s7 = inlined_call_operand.hbm [shape: f32[1,64], index: 7, kind: input, shape index: {}]
  %s8 = inlined_call_operand.hbm [shape: f32[1,32], index: 8, kind: input, shape index: {}]
  %s9 = inlined_call_operand.hbm [shape: bf16[96,128], index: 9, kind: input, shape index: {}]
  %s10 = inlined_call_operand.hbm [shape: f32[1,128], index: 10, kind: input, shape index: {}]
  %s11 = inlined_call_operand.vmem [shape: bf16[32,64], index: 11, kind: input, shape index: {}]
  %s12 = inlined_call_operand.vmem [shape: f32[1,64], index: 12, kind: input, shape index: {}]
  %s13 = inlined_call_operand.hbm [shape: f32[7,4,64], index: 13, kind: output, shape index: {0}]
  %s14 = inlined_call_operand.hbm [shape: f32[7,4,16], index: 14, kind: output, shape index: {1}]
  %15 = xla_tuple %s13, %s14
  %s16 = sld [smem:[#allocation0]]
  $region129: #{tpu_custom_call.1} parent=0
    _
  %s18 = ssub.s32 1, %s16
  %s19 = scalar_select 0, %s18, %s16
  %21 = dma.hbm_to_smem %s0, 16, [#allocation5], [#allocation4]
  %22 = dma.done [#allocation4], 16
  %23 = sfence
  $region1: #{tpu_custom_call.1} parent=0
    #allocation6 [shape = 'u8[16384]{0}', space=vmem, size = 0x4000, scoped, tag = 'input window, operand 1, single buffered']
    #allocation7 [shape = 's32[2]{0}', space=sflag, size = 0x8, scoped, tag = 'scoped memory for tpu_custom_call.1']
    #allocation8 [shape = 's32[2]{0}', space=sflag, size = 0x8, scoped, tag = 'scoped memory for tpu_custom_call.1']
    #allocation9 [shape = 'u8[16384]{0}', space=vmem, size = 0x4000, scoped, tag = 'input window, operand 2, single buffered']
    #allocation10 [shape = 's32[1]{0}', space=sflag, size = 0x4, scoped, tag = 'scoped memory for tpu_custom_call.1']
    #allocation11 [shape = 'u8[2048]{0}', space=vmem, size = 0x800, scoped, tag = 'input window, operand 3']
    #allocation12 [shape = 'u8[2048]{0}', space=vmem, size = 0x800, scoped, tag = 'input window, operand 5, single buffered']
    #allocation13 [shape = 'u8[8192]{0}', space=vmem, size = 0x2000, scoped, tag = 'input window, operand 6, single buffered']
    #allocation14 [shape = 's32[1]{0}', space=sflag, size = 0x4, scoped, tag = 'scoped memory for tpu_custom_call.1']
    #allocation15 [shape = 'u8[512]{0}', space=vmem, size = 0x400, scoped, tag = 'input window, operand 7, single buffered']
    #allocation16 [shape = 'u8[512]{0}', space=vmem, size = 0x400, scoped, tag = 'input window, operand 8, single buffered']
    #allocation17 [shape = 's32[1]{0}', space=sflag, size = 0x4, scoped, tag = 'scoped memory for tpu_custom_call.1']
    #allocation18 [shape = 'u8[24576]{0}', space=vmem, size = 0x6000, scoped, tag = 'input window, operand 9, single buffered']
    #allocation19 [shape = 'u8[512]{0}', space=vmem, size = 0x400, scoped, tag = 'input window, operand 10, single buffered']
    #allocation20 [shape = 's32[1]{0}', space=sflag, size = 0x4, scoped, tag = 'scoped memory for tpu_custom_call.1']
    #allocation21 [shape = 'u8[4096]{0}', space=vmem, size = 0x1000, scoped, tag = 'output window, operand 0']
    #allocation22 [shape = 'u8[4096]{0}', space=vmem, size = 0x1000, scoped, tag = 'output window, operand 1']
    #allocation23 [shape = 's32[2]{0}', space=sflag, size = 0x8, scoped, tag = 'scoped memory for tpu_custom_call.1']
    %24 = vsyncpa [#allocation7], 0
    %25 = vsyncpa [#allocation10], 0
    %26 = vsyncpa [#allocation14], 0
    %27 = vsyncpa [#allocation17], 0
    %28 = vsyncpa [#allocation20], 0
    %29 = vsyncpa [#allocation8], 0
    %s30 = scalar_lea.sflag [#allocation8], 1
    %31 = vsyncpa %s30, 0
    %32 = vsyncpa [#allocation23], 0
    %s33 = scalar_lea.sflag [#allocation23], 1
    %34 = vsyncpa %s33, 0
    loop: start=0, step=1, limit=9
    $region2: #{tpu_custom_call.1} parent=1 // loop_pre_header
      _
    $region3: #{tpu_custom_call.1} parent=1 // loop_header
      %s36 = sphi 0, %s40
      %p37 = scmp.ge.s32.totalorder %s36, 9
      %s44 = sphi 0, %s44
      %s46 = sphi 0, %s44
      %s47 = sphi 0, %s46
      %s61 = sphi 0, %s47
      %s65 = sphi 0, %s65
      %s67 = sphi 0, %s65
      %s68 = sphi 0, %s67
      %s82 = sphi 0, %s68
      %s88 = sphi 0, %s90
      %s91 = sphi 0, %s88
      %s92 = sphi 0, %s91
      %s108 = sphi 0, %s92
      %s112 = sphi 0, %s112
      %s114 = sphi 0, %s112
      %s115 = sphi 0, %s114
      %s129 = sphi 0, %s115
      %s133 = sphi 0, %s133
      %s135 = sphi 0, %s133
      %s136 = sphi 0, %s135
      %s150 = sphi 0, %s136
      %s154 = sphi 0, %s154
      %s156 = sphi 0, %s154
      %s157 = sphi 0, %s156
      %s171 = sphi 0, %s157
      %s175 = sphi 0, %s175
      %s177 = sphi 0, %s175
      %s178 = sphi 0, %s177
      %s192 = sphi 0, %s178
      %s196 = sphi 0, %s196
      %s198 = sphi 0, %s196
      %s199 = sphi 0, %s198
      %s213 = sphi 0, %s199
      %s217 = sphi 0, %s217
      %s219 = sphi 0, %s217
      %s220 = sphi 0, %s219
      %s234 = sphi 0, %s220
      %s238 = sphi 0, %s238
      %s240 = sphi 0, %s238
      %s241 = sphi 0, %s240
      %s255 = sphi 0, %s241
      %s259 = sphi 0, %s259
      %s261 = sphi 0, %s259
      %s262 = sphi 0, %s261
      %s276 = sphi 0, %s262
      %s280 = sphi 0, %s280
      %s282 = sphi 0, %s280
      %s283 = sphi 0, %s282
      %s297 = sphi 0, %s283
      %s303 = sphi 0, %s305
      %s306 = sphi 0, %s303
      %s307 = sphi 0, %s306
      %s323 = sphi 0, %s307
      %s329 = sphi 0, %s331
      %s332 = sphi 0, %s329
      %s333 = sphi 0, %s332
      %s349 = sphi 0, %s333
    $region4: #{tpu_custom_call.1} parent=1 // loop_header_branch
      %39 = sbr.rel (%p37) target = $region8
    $region5: #{tpu_custom_call.1} parent=1 // loop_body
      %s41 = ssub.s32 %s36, 1
      %s42 = ssub.s32 %s36, 2
      %s43 = sadd.s32 %s36, 1
      %s45 = sadd.s32 %s44, 1
      %p48 = scmp.eq.s32.totalorder %s36, 6
      %p49 = scmp.ne.s32.totalorder %s44, %s46
      %p50 = scmp.eq.s32.totalorder %s36, 0
      %p51 = por %p49, %p50
      %p52 = scmp.ne.s32.totalorder %s44, %s46
      %p53 = scmp.eq.s32.totalorder %s41, 6
      %p54 = por %p52, %p53
      %p55 = scmp.ne.s32.totalorder %s46, %s47
      %p56 = scmp.eq.s32.totalorder %s41, 0
      %p57 = por %p55, %p56
      %p58 = scmp.ne.s32.totalorder %s46, %s47
      %p59 = scmp.eq.s32.totalorder %s42, 6
      %p60 = por %p58, %p59
      %p62 = scmp.ne.s32.totalorder %s47, %s61
      %p63 = scmp.eq.s32.totalorder %s42, 0
      %p64 = por %p62, %p63
      %s66 = sadd.s32 %s65, 1
      %p69 = scmp.eq.s32.totalorder %s36, 6
      %p70 = scmp.ne.s32.totalorder %s65, %s67
      %p71 = scmp.eq.s32.totalorder %s36, 0
      %p72 = por %p70, %p71
      %p73 = scmp.ne.s32.totalorder %s65, %s67
      %p74 = scmp.eq.s32.totalorder %s41, 6
      %p75 = por %p73, %p74
      %p76 = scmp.ne.s32.totalorder %s67, %s68
      %p77 = scmp.eq.s32.totalorder %s41, 0
      %p78 = por %p76, %p77
      %p79 = scmp.ne.s32.totalorder %s67, %s68
      %p80 = scmp.eq.s32.totalorder %s42, 6
      %p81 = por %p79, %p80
      %p83 = scmp.ne.s32.totalorder %s68, %s82
      %p84 = scmp.eq.s32.totalorder %s42, 0
      %p85 = por %p83, %p84
      %s86 = ssub.s32 %s36, %s43
      %p87 = scmp.eq.s32.totalorder %s86, 0
      %s89 = sadd.s32 %s88, 1
      %s90 = scalar_select %p87, %s88, %s89
      %p93 = pneg %p87
      %p94 = scmp.eq.s32.totalorder %s36, 6
      %p95 = por %p93, %p94
      %p96 = scmp.ne.s32.totalorder %s88, %s91
      %p97 = scmp.eq.s32.totalorder %s36, 0
      %p98 = por %p96, %p97
      %p99 = scmp.ne.s32.totalorder %s88, %s91
      %p100 = scmp.eq.s32.totalorder %s41, 6
      %p101 = por %p99, %p100
      %p102 = scmp.ne.s32.totalorder %s91, %s92
      %p103 = scmp.eq.s32.totalorder %s41, 0
      %p104 = por %p102, %p103
      %p105 = scmp.ne.s32.totalorder %s91, %s92
      %p106 = scmp.eq.s32.totalorder %s42, 6
      %p107 = por %p105, %p106
      %p109 = scmp.ne.s32.totalorder %s92, %s108
      %p110 = scmp.eq.s32.totalorder %s42, 0
      %p111 = por %p109, %p110
      %s113 = sadd.s32 %s112, 1
      %p116 = scmp.eq.s32.totalorder %s36, 6
      %p117 = scmp.ne.s32.totalorder %s112, %s114
      %p118 = scmp.eq.s32.totalorder %s36, 0
      %p119 = por %p117, %p118
      %p120 = scmp.ne.s32.totalorder %s112, %s114
      %p121 = scmp.eq.s32.totalorder %s41, 6
      %p122 = por %p120, %p121
      %p123 = scmp.ne.s32.totalorder %s114, %s115
      %p124 = scmp.eq.s32.totalorder %s41, 0
      %p125 = por %p123, %p124
      %p126 = scmp.ne.s32.totalorder %s114, %s115
      %p127 = scmp.eq.s32.totalorder %s42, 6
      %p128 = por %p126, %p127
      %p130 = scmp.ne.s32.totalorder %s115, %s129
      %p131 = scmp.eq.s32.totalorder %s42, 0
      %p132 = por %p130, %p131
      %s134 = sadd.s32 %s133, 1
      %p137 = scmp.eq.s32.totalorder %s36, 6
      %p138 = scmp.ne.s32.totalorder %s133, %s135
      %p139 = scmp.eq.s32.totalorder %s36, 0
      %p140 = por %p138, %p139
      %p141 = scmp.ne.s32.totalorder %s133, %s135
      %p142 = scmp.eq.s32.totalorder %s41, 6
      %p143 = por %p141, %p142
      %p144 = scmp.ne.s32.totalorder %s135, %s136
      %p145 = scmp.eq.s32.totalorder %s41, 0
      %p146 = por %p144, %p145
      %p147 = scmp.ne.s32.totalorder %s135, %s136
      %p148 = scmp.eq.s32.totalorder %s42, 6
      %p149 = por %p147, %p148
      %p151 = scmp.ne.s32.totalorder %s136, %s150
      %p152 = scmp.eq.s32.totalorder %s42, 0
      %p153 = por %p151, %p152
      %s155 = sadd.s32 %s154, 1
      %p158 = scmp.eq.s32.totalorder %s36, 6
      %p159 = scmp.ne.s32.totalorder %s154, %s156
      %p160 = scmp.eq.s32.totalorder %s36, 0
      %p161 = por %p159, %p160
      %p162 = scmp.ne.s32.totalorder %s154, %s156
      %p163 = scmp.eq.s32.totalorder %s41, 6
      %p164 = por %p162, %p163
      %p165 = scmp.ne.s32.totalorder %s156, %s157
      %p166 = scmp.eq.s32.totalorder %s41, 0
      %p167 = por %p165, %p166
      %p168 = scmp.ne.s32.totalorder %s156, %s157
      %p169 = scmp.eq.s32.totalorder %s42, 6
      %p170 = por %p168, %p169
      %p172 = scmp.ne.s32.totalorder %s157, %s171
      %p173 = scmp.eq.s32.totalorder %s42, 0
      %p174 = por %p172, %p173
      %s176 = sadd.s32 %s175, 1
      %p179 = scmp.eq.s32.totalorder %s36, 6
      %p180 = scmp.ne.s32.totalorder %s175, %s177
      %p181 = scmp.eq.s32.totalorder %s36, 0
      %p182 = por %p180, %p181
      %p183 = scmp.ne.s32.totalorder %s175, %s177
      %p184 = scmp.eq.s32.totalorder %s41, 6
      %p185 = por %p183, %p184
      %p186 = scmp.ne.s32.totalorder %s177, %s178
      %p187 = scmp.eq.s32.totalorder %s41, 0
      %p188 = por %p186, %p187
      %p189 = scmp.ne.s32.totalorder %s177, %s178
      %p190 = scmp.eq.s32.totalorder %s42, 6
      %p191 = por %p189, %p190
      %p193 = scmp.ne.s32.totalorder %s178, %s192
      %p194 = scmp.eq.s32.totalorder %s42, 0
      %p195 = por %p193, %p194
      %s197 = sadd.s32 %s196, 1
      %p200 = scmp.eq.s32.totalorder %s36, 6
      %p201 = scmp.ne.s32.totalorder %s196, %s198
      %p202 = scmp.eq.s32.totalorder %s36, 0
      %p203 = por %p201, %p202
      %p204 = scmp.ne.s32.totalorder %s196, %s198
      %p205 = scmp.eq.s32.totalorder %s41, 6
      %p206 = por %p204, %p205
      %p207 = scmp.ne.s32.totalorder %s198, %s199
      %p208 = scmp.eq.s32.totalorder %s41, 0
      %p209 = por %p207, %p208
      %p210 = scmp.ne.s32.totalorder %s198, %s199
      %p211 = scmp.eq.s32.totalorder %s42, 6
      %p212 = por %p210, %p211
      %p214 = scmp.ne.s32.totalorder %s199, %s213
      %p215 = scmp.eq.s32.totalorder %s42, 0
      %p216 = por %p214, %p215
      %s218 = sadd.s32 %s217, 1
      %p221 = scmp.eq.s32.totalorder %s36, 6
      %p222 = scmp.ne.s32.totalorder %s217, %s219
      %p223 = scmp.eq.s32.totalorder %s36, 0
      %p224 = por %p222, %p223
      %p225 = scmp.ne.s32.totalorder %s217, %s219
      %p226 = scmp.eq.s32.totalorder %s41, 6
      %p227 = por %p225, %p226
      %p228 = scmp.ne.s32.totalorder %s219, %s220
      %p229 = scmp.eq.s32.totalorder %s41, 0
      %p230 = por %p228, %p229
      %p231 = scmp.ne.s32.totalorder %s219, %s220
      %p232 = scmp.eq.s32.totalorder %s42, 6
      %p233 = por %p231, %p232
      %p235 = scmp.ne.s32.totalorder %s220, %s234
      %p236 = scmp.eq.s32.totalorder %s42, 0
      %p237 = por %p235, %p236
      %s239 = sadd.s32 %s238, 1
      %p242 = scmp.eq.s32.totalorder %s36, 6
      %p243 = scmp.ne.s32.totalorder %s238, %s240
      %p244 = scmp.eq.s32.totalorder %s36, 0
      %p245 = por %p243, %p244
      %p246 = scmp.ne.s32.totalorder %s238, %s240
      %p247 = scmp.eq.s32.totalorder %s41, 6
      %p248 = por %p246, %p247
      %p249 = scmp.ne.s32.totalorder %s240, %s241
      %p250 = scmp.eq.s32.totalorder %s41, 0
      %p251 = por %p249, %p250
      %p252 = scmp.ne.s32.totalorder %s240, %s241
      %p253 = scmp.eq.s32.totalorder %s42, 6
      %p254 = por %p252, %p253
      %p256 = scmp.ne.s32.totalorder %s241, %s255
      %p257 = scmp.eq.s32.totalorder %s42, 0
      %p258 = por %p256, %p257
      %s260 = sadd.s32 %s259, 1
      %p263 = scmp.eq.s32.totalorder %s36, 6
      %p264 = scmp.ne.s32.totalorder %s259, %s261
      %p265 = scmp.eq.s32.totalorder %s36, 0
      %p266 = por %p264, %p265
      %p267 = scmp.ne.s32.totalorder %s259, %s261
      %p268 = scmp.eq.s32.totalorder %s41, 6
      %p269 = por %p267, %p268
      %p270 = scmp.ne.s32.totalorder %s261, %s262
      %p271 = scmp.eq.s32.totalorder %s41, 0
      %p272 = por %p270, %p271
      %p273 = scmp.ne.s32.totalorder %s261, %s262
      %p274 = scmp.eq.s32.totalorder %s42, 6
      %p275 = por %p273, %p274
      %p277 = scmp.ne.s32.totalorder %s262, %s276
      %p278 = scmp.eq.s32.totalorder %s42, 0
      %p279 = por %p277, %p278
      %s281 = sadd.s32 %s280, 1
      %p284 = scmp.eq.s32.totalorder %s36, 6
      %p285 = scmp.ne.s32.totalorder %s280, %s282
      %p286 = scmp.eq.s32.totalorder %s36, 0
      %p287 = por %p285, %p286
      %p288 = scmp.ne.s32.totalorder %s280, %s282
      %p289 = scmp.eq.s32.totalorder %s41, 6
      %p290 = por %p288, %p289
      %p291 = scmp.ne.s32.totalorder %s282, %s283
      %p292 = scmp.eq.s32.totalorder %s41, 0
      %p293 = por %p291, %p292
      %p294 = scmp.ne.s32.totalorder %s282, %s283
      %p295 = scmp.eq.s32.totalorder %s42, 6
      %p296 = por %p294, %p295
      %p298 = scmp.ne.s32.totalorder %s283, %s297
      %p299 = scmp.eq.s32.totalorder %s42, 0
      %p300 = por %p298, %p299
      %s301 = ssub.s32 %s36, %s43
      %p302 = scmp.eq.s32.totalorder %s301, 0
      %s304 = sadd.s32 %s303, 1
      %s305 = scalar_select %p302, %s303, %s304
      %p308 = pneg %p302
      %p309 = scmp.eq.s32.totalorder %s36, 6
      %p310 = por %p308, %p309
      %p311 = scmp.ne.s32.totalorder %s303, %s306
      %p312 = scmp.eq.s32.totalorder %s36, 0
      %p313 = por %p311, %p312
      %p314 = scmp.ne.s32.totalorder %s303, %s306
      %p315 = scmp.eq.s32.totalorder %s41, 6
      %p316 = por %p314, %p315
      %p317 = scmp.ne.s32.totalorder %s306, %s307
      %p318 = scmp.eq.s32.totalorder %s41, 0
      %p319 = por %p317, %p318
      %p320 = scmp.ne.s32.totalorder %s306, %s307
      %p321 = scmp.eq.s32.totalorder %s42, 6
      %p322 = por %p320, %p321
      %p324 = scmp.ne.s32.totalorder %s307, %s323
      %p325 = scmp.eq.s32.totalorder %s42, 0
      %p326 = por %p324, %p325
      %s327 = ssub.s32 %s36, %s43
      %p328 = scmp.eq.s32.totalorder %s327, 0
      %s330 = sadd.s32 %s329, 1
      %s331 = scalar_select %p328, %s329, %s330
      %p334 = pneg %p328
      %p335 = scmp.eq.s32.totalorder %s36, 6
      %p336 = por %p334, %p335
      %p337 = scmp.ne.s32.totalorder %s329, %s332
      %p338 = scmp.eq.s32.totalorder %s36, 0
      %p339 = por %p337, %p338
      %p340 = scmp.ne.s32.totalorder %s329, %s332
      %p341 = scmp.eq.s32.totalorder %s41, 6
      %p342 = por %p340, %p341
      %p343 = scmp.ne.s32.totalorder %s332, %s333
      %p344 = scmp.eq.s32.totalorder %s41, 0
      %p345 = por %p343, %p344
      %p346 = scmp.ne.s32.totalorder %s332, %s333
      %p347 = scmp.eq.s32.totalorder %s42, 6
      %p348 = por %p346, %p347
      %p350 = scmp.ne.s32.totalorder %s333, %s349
      %p351 = scmp.eq.s32.totalorder %s42, 0
      %p352 = por %p350, %p351
      %p353 = scmp.le.s32.totalorder 1, %s36
      %p354 = scmp.lt.s32.totalorder %s36, 8
      %p355 = pnand %p353, %p354
      %p356 = pneg %p355
      // Predicated region
      $region9: #{tpu_custom_call.1} parent=5 // pred_check
        _
      $region10: #{tpu_custom_call.1} parent=5 // pred_check_branch
        %358 = sbr.rel (%p355) target = $region12
      $region11: #{tpu_custom_call.1} parent=5 // pred_region
        %s359 = ssub.s32 %s36, 1
        // Predicated region
        $region13: #{tpu_custom_call.1} parent=11 // pred_check
          %p360 = pneg %p57
        $region14: #{tpu_custom_call.1} parent=11 // pred_check_branch
          %362 = sbr.rel (%p360) target = $region16
        $region15: #{tpu_custom_call.1} parent=11 // pred_region
          %s364 = ssub.s32 512, 512
          %365 = vsyncadd [#allocation7], %s364
          %s366 = sshll.u32 [#allocation6], 4
          %s367 = int_to_ptr.vmem [resolvable:$true] %s366
          %372 = dma.hbm_to_vmem [thread:$0]  %s1, 512, %s367, [#allocation7], 64, 64, 4
        $region16: #{tpu_custom_call.1} parent=11 // pred_fallthru
          _
        // Predicated region
        $region17: #{tpu_custom_call.1} parent=11 // pred_check
          %p373 = pneg %p78
        $region18: #{tpu_custom_call.1} parent=11 // pred_check_branch
          %375 = sbr.rel (%p373) target = $region20
        $region19: #{tpu_custom_call.1} parent=11 // pred_region
          %s377 = ssub.s32 512, 512
          %378 = vsyncadd [#allocation10], %s377
          %s379 = sshll.u32 [#allocation9], 4
          %s380 = int_to_ptr.vmem [resolvable:$true] %s379
          %385 = dma.hbm_to_vmem [thread:$0]  %s2, 512, %s380, [#allocation10], 64, 64, 4
        $region20: #{tpu_custom_call.1} parent=11 // pred_fallthru
          _
        // Predicated region
        $region21: #{tpu_custom_call.1} parent=11 // pred_check
          %p386 = pneg %p125
        $region22: #{tpu_custom_call.1} parent=11 // pred_check_branch
          %388 = sbr.rel (%p386) target = $region24
        $region23: #{tpu_custom_call.1} parent=11 // pred_region
          _
        $region24: #{tpu_custom_call.1} parent=11 // pred_fallthru
          _
        // Predicated region
        $region25: #{tpu_custom_call.1} parent=11 // pred_check
          %p389 = pneg %p146
        $region26: #{tpu_custom_call.1} parent=11 // pred_check_branch
          %391 = sbr.rel (%p389) target = $region28
        $region27: #{tpu_custom_call.1} parent=11 // pred_region
          %s393 = ssub.s32 64, 64
          %394 = vsyncadd [#allocation10], %s393
          %s396 = sshll.u32 [#allocation12], 4
          %s397 = int_to_ptr.vmem [resolvable:$true] %s396
          %399 = dma.hbm_to_vmem [thread:$0]  %s5, 64, %s397, [#allocation10]
        $region28: #{tpu_custom_call.1} parent=11 // pred_fallthru
          _
        // Predicated region
        $region29: #{tpu_custom_call.1} parent=11 // pred_check
          %p400 = pneg %p167
        $region30: #{tpu_custom_call.1} parent=11 // pred_check_branch
          %402 = sbr.rel (%p400) target = $region32
        $region31: #{tpu_custom_call.1} parent=11 // pred_region
          %s404 = ssub.s32 256, 256
          %405 = vsyncadd [#allocation14], %s404
          %s406 = sshll.u32 [#allocation13], 4
          %s407 = int_to_ptr.vmem [resolvable:$true] %s406
          %412 = dma.hbm_to_vmem [thread:$0]  %s6, 256, %s407, [#allocation14], 64, 64, 4
        $region32: #{tpu_custom_call.1} parent=11 // pred_fallthru
          _
        // Predicated region
        $region33: #{tpu_custom_call.1} parent=11 // pred_check
          %p413 = pneg %p188
        $region34: #{tpu_custom_call.1} parent=11 // pred_check_branch
          %415 = sbr.rel (%p413) target = $region36
        $region35: #{tpu_custom_call.1} parent=11 // pred_region
          %s417 = ssub.s32 16, 16
          %418 = vsyncadd [#allocation14], %s417
          %s420 = sshll.u32 [#allocation15], 4
          %s421 = int_to_ptr.vmem [resolvable:$true] %s420
          %423 = dma.hbm_to_vmem [thread:$0]  %s7, 16, %s421, [#allocation14]
        $region36: #{tpu_custom_call.1} parent=11 // pred_fallthru
          _
        // Predicated region
        $region37: #{tpu_custom_call.1} parent=11 // pred_check
          %p424 = pneg %p209
        $region38: #{tpu_custom_call.1} parent=11 // pred_check_branch
          %426 = sbr.rel (%p424) target = $region40
        $region39: #{tpu_custom_call.1} parent=11 // pred_region
          %s428 = ssub.s32 16, 16
          %429 = vsyncadd [#allocation17], %s428
          %s431 = sshll.u32 [#allocation16], 4
          %s432 = int_to_ptr.vmem [resolvable:$true] %s431
          %434 = dma.hbm_to_vmem [thread:$0]  %s8, 16, %s432, [#allocation17]
        $region40: #{tpu_custom_call.1} parent=11 // pred_fallthru
          _
        // Predicated region
        $region41: #{tpu_custom_call.1} parent=11 // pred_check
          %p435 = pneg %p230
        $region42: #{tpu_custom_call.1} parent=11 // pred_check_branch
          %437 = sbr.rel (%p435) target = $region44
        $region43: #{tpu_custom_call.1} parent=11 // pred_region
          %s439 = ssub.s32 768, 768
          %440 = vsyncadd [#allocation17], %s439
          %s441 = sshll.u32 [#allocation18], 4
          %s442 = int_to_ptr.vmem [resolvable:$true] %s441
          %447 = dma.hbm_to_vmem [thread:$0]  %s9, 768, %s442, [#allocation17], 64, 64, 4
        $region44: #{tpu_custom_call.1} parent=11 // pred_fallthru
          _
        // Predicated region
        $region45: #{tpu_custom_call.1} parent=11 // pred_check
          %p448 = pneg %p251
        $region46: #{tpu_custom_call.1} parent=11 // pred_check_branch
          %450 = sbr.rel (%p448) target = $region48
        $region47: #{tpu_custom_call.1} parent=11 // pred_region
          %s452 = ssub.s32 16, 16
          %453 = vsyncadd [#allocation20], %s452
          %s455 = sshll.u32 [#allocation19], 4
          %s456 = int_to_ptr.vmem [resolvable:$true] %s455
          %458 = dma.hbm_to_vmem [thread:$0]  %s10, 16, %s456, [#allocation20]
        $region48: #{tpu_custom_call.1} parent=11 // pred_fallthru
          _
        // Predicated region
        $region49: #{tpu_custom_call.1} parent=11 // pred_check
          %p459 = pneg %p272
        $region50: #{tpu_custom_call.1} parent=11 // pred_check_branch
          %461 = sbr.rel (%p459) target = $region52
        $region51: #{tpu_custom_call.1} parent=11 // pred_region
          _
        $region52: #{tpu_custom_call.1} parent=11 // pred_fallthru
          _
        // Predicated region
        $region53: #{tpu_custom_call.1} parent=11 // pred_check
          %p462 = pneg %p293
        $region54: #{tpu_custom_call.1} parent=11 // pred_check_branch
          %464 = sbr.rel (%p462) target = $region56
        $region55: #{tpu_custom_call.1} parent=11 // pred_region
          _
        $region56: #{tpu_custom_call.1} parent=11 // pred_fallthru
          _
      $region12: #{tpu_custom_call.1} parent=5 // pred_fallthru
        _
      %p465 = scmp.lt.s32.totalorder %s36, 7
      // Predicated region
      $region57: #{tpu_custom_call.1} parent=5 // pred_check
        %p466 = pneg %p465
      $region58: #{tpu_custom_call.1} parent=5 // pred_check_branch
        %468 = sbr.rel (%p466) target = $region60
      $region59: #{tpu_custom_call.1} parent=5 // pred_region
        // Predicated region
        $region61: #{tpu_custom_call.1} parent=59 // pred_check
          %p469 = pneg %p98
        $region62: #{tpu_custom_call.1} parent=59 // pred_check_branch
          %471 = sbr.rel (%p469) target = $region64
        $region63: #{tpu_custom_call.1} parent=59 // pred_region
          %s472 = sand.u32 %s36, 1
          %s473 = scalar_lea.sflag [#allocation7], %s472
          %s474 = sand.u32 %s88, 1
          %s475 = smul.addr %s474, 2
          %s476 = scalar_lea.vmem [#allocation11], %s475
          %s478 = ssub.s32 32, 32
          %479 = vsyncadd %s473, %s478
          %s480 = smul.addr %s36, 32
          %s481 = scalar_lea.hbm %s3, %s480
          %s483 = sshll.u32 %s476, 4
          %s484 = int_to_ptr.vmem [resolvable:$true] %s483
          %486 = dma.hbm_to_vmem [thread:$0]  %s481, 32, %s484, %s473
        $region64: #{tpu_custom_call.1} parent=59 // pred_fallthru
          _
      $region60: #{tpu_custom_call.1} parent=5 // pred_fallthru
        _
      %p487 = scmp.le.s32.totalorder 1, %s36
      %p488 = scmp.lt.s32.totalorder %s36, 8
      %p489 = pnand %p487, %p488
      %p490 = pneg %p489
      // Predicated region
      $region65: #{tpu_custom_call.1} parent=5 // pred_check
        _
      $region66: #{tpu_custom_call.1} parent=5 // pred_check_branch
        %492 = sbr.rel (%p489) target = $region68
      $region67: #{tpu_custom_call.1} parent=5 // pred_region
        %s493 = ssub.s32 %s36, 1
        // Predicated region
        $region69: #{tpu_custom_call.1} parent=67 // pred_check
          %p494 = pneg %p57
        $region70: #{tpu_custom_call.1} parent=67 // pred_check_branch
          %496 = sbr.rel (%p494) target = $region72
        $region71: #{tpu_custom_call.1} parent=67 // pred_region
          %497 = dma.done [#allocation7], 512
        $region72: #{tpu_custom_call.1} parent=67 // pred_fallthru
          _
        // Predicated region
        $region73: #{tpu_custom_call.1} parent=67 // pred_check
          %p498 = pneg %p78
        $region74: #{tpu_custom_call.1} parent=67 // pred_check_branch
          %500 = sbr.rel (%p498) target = $region76
        $region75: #{tpu_custom_call.1} parent=67 // pred_region
          %501 = dma.done [#allocation10], 512
        $region76: #{tpu_custom_call.1} parent=67 // pred_fallthru
          _
        %s502 = sand.u32 %s41, 1
        %s503 = scalar_lea.sflag [#allocation7], %s502
        %s504 = sand.u32 %s91, 1
        %s505 = smul.addr %s504, 2
        %s506 = scalar_lea.vmem [#allocation11], %s505
        // Predicated region
        $region77: #{tpu_custom_call.1} parent=67 // pred_check
          %p507 = pneg %p104
        $region78: #{tpu_custom_call.1} parent=67 // pred_check_branch
          %509 = sbr.rel (%p507) target = $region80
        $region79: #{tpu_custom_call.1} parent=67 // pred_region
          %510 = dma.done %s503, 32
        $region80: #{tpu_custom_call.1} parent=67 // pred_fallthru
          _
        // Predicated region
        $region81: #{tpu_custom_call.1} parent=67 // pred_check
          %p511 = pneg %p146
        $region82: #{tpu_custom_call.1} parent=67 // pred_check_branch
          %513 = sbr.rel (%p511) target = $region84
        $region83: #{tpu_custom_call.1} parent=67 // pred_region
          %514 = dma.done [#allocation10], 64
        $region84: #{tpu_custom_call.1} parent=67 // pred_fallthru
          _
        // Predicated region
        $region85: #{tpu_custom_call.1} parent=67 // pred_check
          %p515 = pneg %p167
        $region86: #{tpu_custom_call.1} parent=67 // pred_check_branch
          %517 = sbr.rel (%p515) target = $region88
        $region87: #{tpu_custom_call.1} parent=67 // pred_region
          %518 = dma.done [#allocation14], 256
        $region88: #{tpu_custom_call.1} parent=67 // pred_fallthru
          _
        // Predicated region
        $region89: #{tpu_custom_call.1} parent=67 // pred_check
          %p519 = pneg %p188
        $region90: #{tpu_custom_call.1} parent=67 // pred_check_branch
          %521 = sbr.rel (%p519) target = $region92
        $region91: #{tpu_custom_call.1} parent=67 // pred_region
          %522 = dma.done [#allocation14], 16
        $region92: #{tpu_custom_call.1} parent=67 // pred_fallthru
          _
        // Predicated region
        $region93: #{tpu_custom_call.1} parent=67 // pred_check
          %p523 = pneg %p209
        $region94: #{tpu_custom_call.1} parent=67 // pred_check_branch
          %525 = sbr.rel (%p523) target = $region96
        $region95: #{tpu_custom_call.1} parent=67 // pred_region
          %526 = dma.done [#allocation17], 16
        $region96: #{tpu_custom_call.1} parent=67 // pred_fallthru
          _
        // Predicated region
        $region97: #{tpu_custom_call.1} parent=67 // pred_check
          %p527 = pneg %p230
        $region98: #{tpu_custom_call.1} parent=67 // pred_check_branch
          %529 = sbr.rel (%p527) target = $region100
        $region99: #{tpu_custom_call.1} parent=67 // pred_region
          %530 = dma.done [#allocation17], 768
        $region100: #{tpu_custom_call.1} parent=67 // pred_fallthru
          _
        // Predicated region
        $region101: #{tpu_custom_call.1} parent=67 // pred_check
          %p531 = pneg %p251
        $region102: #{tpu_custom_call.1} parent=67 // pred_check_branch
          %533 = sbr.rel (%p531) target = $region104
        $region103: #{tpu_custom_call.1} parent=67 // pred_region
          %534 = dma.done [#allocation20], 16
        $region104: #{tpu_custom_call.1} parent=67 // pred_fallthru
          _
        %p535 = pneg %p57
        %p536 = pneg %p54
        %p537 = pneg %p78
        %p538 = pneg %p75
        %s539 = sand.u32 %s41, 1
        %s540 = scalar_lea.sflag [#allocation7], %s539
        %s541 = sand.u32 %s91, 1
        %s542 = smul.addr %s541, 2
        %s543 = scalar_lea.vmem [#allocation11], %s542
        %p544 = pneg %p104
        %p545 = pneg %p101
        %p546 = pneg %p125
        %p547 = pneg %p122
        %p548 = pneg %p146
        %p549 = pneg %p143
        %p550 = pneg %p167
        %p551 = pneg %p164
        %p552 = pneg %p188
        %p553 = pneg %p185
        %p554 = pneg %p209
        %p555 = pneg %p206
        %p556 = pneg %p230
        %p557 = pneg %p227
        %p558 = pneg %p251
        %p559 = pneg %p248
        %p560 = pneg %p272
        %p561 = pneg %p269
        %p562 = pneg %p293
        %p563 = pneg %p290
        %p564 = pneg %p319
        %p565 = pneg %p316
        %s566 = sand.u32 %s306, 1
        %s567 = scalar_lea.sflag [#allocation8], %s566
        %s568 = sand.u32 %s306, 1
        %s569 = smul.addr %s568, 4
        %s570 = scalar_lea.vmem [#allocation21], %s569
        %p571 = pneg %p345
        %p572 = pneg %p342
        %s573 = sand.u32 %s332, 1
        %s574 = scalar_lea.sflag [#allocation23], %s573
        %s575 = sand.u32 %s332, 1
        %s576 = smul.addr %s575, 4
        %s577 = scalar_lea.vmem [#allocation22], %s576
        %p579 = scmp.eq.s32.totalorder %s41, 0
        // Predicated region
        $region105: #{tpu_custom_call.1} parent=67 // pred_check
          %p580 = pneg %p579
        $region106: #{tpu_custom_call.1} parent=67 // pred_check_branch
          %582 = sbr.rel (%p580) target = $region108
        $region107: #{tpu_custom_call.1} parent=67 // pred_region
          %v583 = vld [vmem:[%s4] sm:$0xf]
          %vm584 = vcmask 257024
          %585 = vst.msk [vmem:[#allocation2] sm:$0xf] %vm584, %v583
          %v586 = vld [vmem:[#allocation12] sm:$0xf]
          %587 = vst.msk [vmem:[#allocation3] sm:$0xf] %vm584, %v586
        $region108: #{tpu_custom_call.1} parent=67 // pred_fallthru
          _
        %v588 = vld [vmem:[#allocation2] sm:$0xf]
        %v589 = vld [vmem:[#allocation3] sm:$0xf]
        %v590 = vpack.c.bf16 %v588, %v588
        %v591 = vld [vmem:[#allocation13] sm:$0xf]
        %v592 = vld [vmem:[#allocation13 + $0x4] sm:$0xf]
        %v593 = vld [vmem:[#allocation13 + $0x8] sm:$0xf]
        %v594 = vld [vmem:[#allocation13 + $0xc] sm:$0xf]
        %v595 = vld [vmem:[#allocation15] sm:$0x1]
        %v597 = vlaneseq
        %v598 = vshrl.u32 %v597, 7
        %v599 = vsub.s32 0, %v598
        %v600 = vrot.slane %v595, %v599
        %v606 = vunpack.c.l.b16 %v591
        %v607 = vunpack.c.l.b16 %v592
        %v608 = vunpack.c.l.b16 %v593
        %v609 = vunpack.c.l.b16 %v594
        %v610 = vpack.c.b16 %v607, %v606
        %v611 = vpack.c.b16 %v609, %v608
        %vm614 = vcmask 261120
        %v616 = vsel %vm614, %v590, 0
        %618 = vmatprep.subr.bf16.mxu0 0
        %619 = vmatpush1.bf16.msra.mxu0 0
        %620 = vmatprep.subr.bf16.mxu0 0
        %621 = vmatpush1.bf16.msra.mxu0 0
        %622 = vmatprep.subr.bf16.mxu0 0
        %623 = vmatpush1.bf16.msra.mxu0 0
        %624 = vmatprep.subr.bf16.mxu0 0
        %625 = vmatpush1.bf16.msra.mxu0 0
        %626 = vmatprep.subr.bf16.mxu0 0
        %627 = vmatpush1.bf16.msra.mxu0 0
        %628 = vmatprep.subr.bf16.mxu0 0
        %629 = vmatpush1.bf16.msra.mxu0 0
        %630 = vmatprep.subr.bf16.mxu0 0
        %631 = vmatpush1.bf16.msra.mxu0 %v611
        %632 = vmatprep.subr.bf16.mxu0 0
        %633 = vmatpush1.bf16.msra.mxu0 %v610
        %634 = vmatprep.subr.bf16.mxu0 0
        %635 = vmatpush2.bf16.msra.mxu0 0
        %636 = vmatprep.subr.bf16.mxu0 0
        %637 = vmatpush2.bf16.msra.mxu0 0
        %638 = vmatprep.subr.bf16.mxu0 0
        %639 = vmatpush2.bf16.msra.mxu0 0
        %640 = vmatprep.subr.bf16.mxu0 0
        %641 = vmatpush2.bf16.msra.mxu0 0
        %642 = vmatprep.subr.bf16.mxu0 0
        %643 = vmatpush2.bf16.msra.mxu0 0
        %644 = vmatprep.subr.bf16.mxu0 0
        %645 = vmatpush2.bf16.msra.mxu0 0
        %646 = vmatprep.subr.bf16.mxu0 0
        %647 = vmatpush2.bf16.msra.mxu0 0
        %648 = vmatprep.subr.bf16.mxu0 0
        %649 = vmatpush2.bf16.msra.mxu0 0
        %650 = vmatprep.mubr.bf16.mxu0 0
        %651 = vmatmul.mubr.bf16.gmra.mxu0 %v616
        %v652 = vpop.f32.mrf.mxu0
        %v653 = vadd.f32 %v600, %v652
        %v654 = vpop.f32.mrf.mxu0
        %v655 = vpop.f32.mrf.mxu0
        %v656 = vpop.f32.mrf.mxu0
        %657 = vdwg.mxu0
        %v658 = vxor.u32 %v653, 2147483648
        %v659 = vmul.f32 %v658, 1.442695
        %v660 = vpow.pop %v659
        %v661 = vadd.f32 %v660, 1.0
        %v662 = vrcp.pop %v661
        %v663 = vmul.f32 1.0, %v662
        %v664 = vld [vmem:[#allocation6] sm:$0xf]
        %v665 = vld [vmem:[#allocation6 + $0x4] sm:$0xf]
        %v666 = vld [vmem:[#allocation6 + $0x8] sm:$0xf]
        %v667 = vld [vmem:[#allocation6 + $0xc] sm:$0xf]
        %v668 = vld [vmem:[#allocation6 + $0x10] sm:$0xf]
        %v669 = vld [vmem:[#allocation6 + $0x14] sm:$0xf]
        %v670 = vld [vmem:[#allocation6 + $0x18] sm:$0xf]
        %v671 = vld [vmem:[#allocation6 + $0x1c] sm:$0xf]
        %v672 = vunpack.c.l.bf16 %v664
        %v673 = vunpack.c.l.bf16 %v665
        %v674 = vunpack.c.l.bf16 %v666
        %v675 = vunpack.c.l.bf16 %v667
        %v676 = vunpack.c.l.bf16 %v668
        %v677 = vunpack.c.l.bf16 %v669
        %v678 = vunpack.c.l.bf16 %v670
        %v679 = vunpack.c.l.bf16 %v671
        %v682 = vunpack.c.l.s4 1966171168
        %v683 = vunpack.c.0.s8 %v682
        %v684 = vlaneseq
        %v685 = vshrl.u32 %v684, 7
        %v686 = vsub.s32 %v683, %v685
        %v687 = vrot.slane %v653, %v686
        %v688 = vcombine.high %v687, %v687
        %v690 = vunpack.c.l.s4 1966171168
        %v691 = vunpack.c.0.s8 %v690
        %v692 = vlaneseq
        %v693 = vshrl.u32 %v692, 7
        %v694 = vsub.s32 %v691, %v693
        %v695 = vrot.slane %v687, %v694
        %v697 = vunpack.c.l.s4 1966171168
        %v698 = vunpack.c.0.s8 %v697
        %v699 = vlaneseq
        %v700 = vshrl.u32 %v699, 7
        %v701 = vsub.s32 %v698, %v700
        %v702 = vrot.slane %v688, %v701
        %v703 = vcombine.high %v695, %v695
        %v704 = vcombine.high %v702, %v702
        %v705 = vlaneseq
        %v706 = vshrl.u32 %v705, 7
        %v707 = vsub.s32 0, %v706
        %v708 = vrot.slane %v695, %v707
        %v709 = vlaneseq
        %v710 = vshrl.u32 %v709, 7
        %v711 = vsub.s32 0, %v710
        %v712 = vrot.slane %v702, %v711
        %v713 = vlaneseq
        %v714 = vshrl.u32 %v713, 7
        %v715 = vsub.s32 0, %v714
        %v716 = vrot.slane %v703, %v715
        %v717 = vlaneseq
        %v718 = vshrl.u32 %v717, 7
        %v719 = vsub.s32 0, %v718
        %v720 = vrot.slane %v704, %v719
        %v725 = vadd.f32 %v672, %v708
        %v726 = vadd.f32 %v673, %v708
        %v727 = vadd.f32 %v674, %v712
        %v728 = vadd.f32 %v675, %v712
        %v729 = vadd.f32 %v676, %v716
        %v730 = vadd.f32 %v677, %v716
        %v731 = vadd.f32 %v678, %v720
        %v732 = vadd.f32 %v679, %v720
        %v733 = vmax.f32 %v725, 0.0
        %v734 = vmax.f32 %v726, 0.0
        %v735 = vmax.f32 %v727, 0.0
        %v736 = vmax.f32 %v728, 0.0
        %v737 = vmax.f32 %v729, 0.0
        %v738 = vmax.f32 %v730, 0.0
        %v739 = vmax.f32 %v731, 0.0
        %v740 = vmax.f32 %v732, 0.0
        %v741 = vld [vmem:[#allocation16] sm:$0x1]
        %v743 = vlaneseq
        %v744 = vshrl.u32 %v743, 7
        %v745 = vsub.s32 0, %v744
        %v746 = vrot.slane %v741, %v745
        %v748 = vmul.f32 %v733, %v746
        %v749 = vmul.f32 %v734, %v746
        %v750 = vmul.f32 %v735, %v746
        %v751 = vmul.f32 %v736, %v746
        %v752 = vmul.f32 %v737, %v746
        %v753 = vmul.f32 %v738, %v746
        %v754 = vmul.f32 %v739, %v746
        %v755 = vmul.f32 %v740, %v746
        %v756 = vsel %vm614, %v748, 0.0
        %757 = vadd.xlane.f32.xlu0 %v756
        %v758 = vpop.xlane.xlu0 %757
        %v759 = vsel %vm614, %v749, 0.0
        %760 = vadd.xlane.f32.xlu0 %v759
        %v761 = vpop.xlane.xlu0 %760
        %v762 = vsel %vm614, %v750, 0.0
        %763 = vadd.xlane.f32.xlu0 %v762
        %v764 = vpop.xlane.xlu0 %763
        %v765 = vsel %vm614, %v751, 0.0
        %766 = vadd.xlane.f32.xlu0 %v765
        %v767 = vpop.xlane.xlu0 %766
        %v768 = vsel %vm614, %v752, 0.0
        %769 = vadd.xlane.f32.xlu0 %v768
        %v770 = vpop.xlane.xlu0 %769
        %v771 = vsel %vm614, %v753, 0.0
        %772 = vadd.xlane.f32.xlu0 %v771
        %v773 = vpop.xlane.xlu0 %772
        %v774 = vsel %vm614, %v754, 0.0
        %775 = vadd.xlane.f32.xlu0 %v774
        %v776 = vpop.xlane.xlu0 %775
        %v777 = vsel %vm614, %v755, 0.0
        %778 = vadd.xlane.f32.xlu0 %v777
        %v779 = vpop.xlane.xlu0 %778
        %v788 = vlaneseq
        %v789 = vand.u32 %v788, 127
        %v790 = vlaneseq
        %v791 = vshrl.u32 %v790, 7
        %v792 = vsub.s32 %v789, %v791
        %v793 = vrot.slane %v758, %v792
        %v794 = vadd.s32 %v789, 4294967288
        %v795 = vlaneseq
        %v796 = vshrl.u32 %v795, 7
        %v797 = vsub.s32 %v794, %v796
        %v798 = vrot.slane %v761, %v797
        %vm799 = vcmask 130112
        %v800 = vsel %vm799, %v798, %v793
        %v801 = vlaneseq
        %v802 = vshrl.u32 %v801, 7
        %v803 = vsub.s32 %v789, %v802
        %v804 = vrot.slane %v764, %v803
        %v805 = vlaneseq
        %v806 = vshrl.u32 %v805, 7
        %v807 = vsub.s32 %v794, %v806
        %v808 = vrot.slane %v767, %v807
        %v809 = vsel %vm799, %v808, %v804
        %v810 = vlaneseq
        %v811 = vshrl.u32 %v810, 7
        %v812 = vsub.s32 %v789, %v811
        %v813 = vrot.slane %v770, %v812
        %v814 = vlaneseq
        %v815 = vshrl.u32 %v814, 7
        %v816 = vsub.s32 %v794, %v815
        %v817 = vrot.slane %v773, %v816
        %v818 = vsel %vm799, %v817, %v813
        %v819 = vlaneseq
        %v820 = vshrl.u32 %v819, 7
        %v821 = vsub.s32 %v789, %v820
        %v822 = vrot.slane %v776, %v821
        %v823 = vlaneseq
        %v824 = vshrl.u32 %v823, 7
        %v825 = vsub.s32 %v794, %v824
        %v826 = vrot.slane %v779, %v825
        %v827 = vsel %vm799, %v826, %v822
        %vm828 = vcmask 1041409
        %v829 = vsel %vm828, %v809, %v800
        %vm830 = vcmask 1042434
        %v831 = vsel %vm830, %v818, %v829
        %vm832 = vcmask 1043459
        %v833 = vsel %vm832, %v827, %v831
        %vm835 = vcmask 125952
        %v836 = vsel %vm835, %v833, -inf
        %837 = vmax.xlane.f32.xlu0 %v836
        %v838 = vpop.xlane.xlu0 %837
        %v840 = vlaneseq
        %v841 = vshrl.u32 %v840, 7
        %v842 = vsub.s32 0, %v841
        %v843 = vrot.slane %v838, %v842
        %v844 = vlaneseq
        %v845 = vshrl.u32 %v844, 7
        %v846 = vsub.s32 1, %v845
        %v847 = vrot.slane %v838, %v846
        %v848 = vlaneseq
        %v849 = vshrl.u32 %v848, 7
        %v850 = vsub.s32 2, %v849
        %v851 = vrot.slane %v838, %v850
        %v852 = vlaneseq
        %v853 = vshrl.u32 %v852, 7
        %v854 = vsub.s32 3, %v853
        %v855 = vrot.slane %v838, %v854
        %v860 = vsub.f32 %v758, %v843
        %v861 = vsub.f32 %v761, %v843
        %v862 = vsub.f32 %v764, %v847
        %v863 = vsub.f32 %v767, %v847
        %v864 = vsub.f32 %v770, %v851
        %v865 = vsub.f32 %v773, %v851
        %v866 = vsub.f32 %v776, %v855
        %v867 = vsub.f32 %v779, %v855
        %v868 = vmul.f32 %v860, 1.442695
        %v869 = vpow.pop %v868
        %v870 = vmul.f32 %v861, 1.442695
        %v871 = vpow.pop %v870
        %v872 = vmul.f32 %v862, 1.442695
        %v873 = vpow.pop %v872
        %v874 = vmul.f32 %v863, 1.442695
        %v875 = vpow.pop %v874
        %v876 = vmul.f32 %v864, 1.442695
        %v877 = vpow.pop %v876
        %v878 = vmul.f32 %v865, 1.442695
        %v879 = vpow.pop %v878
        %v880 = vmul.f32 %v866, 1.442695
        %v881 = vpow.pop %v880
        %v882 = vmul.f32 %v867, 1.442695
        %v883 = vpow.pop %v882
        %892 = vset.pattern.permute.xlu0 0
        %893 = vperm.xlu0 %892, %v869
        %v894 = vpop.permute.xlu0 %893
        %895 = vset.pattern.permute.xlu0 0
        %896 = vperm.xlu0 %895, %v871
        %v897 = vpop.permute.xlu0 %896
        %898 = vset.pattern.permute.xlu0 0
        %899 = vperm.xlu0 %898, %v873
        %v900 = vpop.permute.xlu0 %899
        %901 = vset.pattern.permute.xlu0 0
        %902 = vperm.xlu0 %901, %v875
        %v903 = vpop.permute.xlu0 %902
        %904 = vset.pattern.permute.xlu0 0
        %905 = vperm.xlu0 %904, %v877
        %v906 = vpop.permute.xlu0 %905
        %907 = vset.pattern.permute.xlu0 0
        %908 = vperm.xlu0 %907, %v879
        %v909 = vpop.permute.xlu0 %908
        %910 = vset.pattern.permute.xlu0 0
        %911 = vperm.xlu0 %910, %v881
        %v912 = vpop.permute.xlu0 %911
        %913 = vset.pattern.permute.xlu0 0
        %914 = vperm.xlu0 %913, %v883
        %v915 = vpop.permute.xlu0 %914
        %v916 = vlaneseq
        %v917 = vshrl.u32 %v916, 7
        %v918 = vsub.s32 %v789, %v917
        %v919 = vrot.slane %v894, %v918
        %v920 = vlaneseq
        %v921 = vshrl.u32 %v920, 7
        %v922 = vsub.s32 %v794, %v921
        %v923 = vrot.slane %v897, %v922
        %v924 = vsel %vm799, %v923, %v919
        %v925 = vlaneseq
        %v926 = vshrl.u32 %v925, 7
        %v927 = vsub.s32 %v789, %v926
        %v928 = vrot.slane %v900, %v927
        %v929 = vlaneseq
        %v930 = vshrl.u32 %v929, 7
        %v931 = vsub.s32 %v794, %v930
        %v932 = vrot.slane %v903, %v931
        %v933 = vsel %vm799, %v932, %v928
        %v934 = vlaneseq
        %v935 = vshrl.u32 %v934, 7
        %v936 = vsub.s32 %v789, %v935
        %v937 = vrot.slane %v906, %v936
        %v938 = vlaneseq
        %v939 = vshrl.u32 %v938, 7
        %v940 = vsub.s32 %v794, %v939
        %v941 = vrot.slane %v909, %v940
        %v942 = vsel %vm799, %v941, %v937
        %v943 = vlaneseq
        %v944 = vshrl.u32 %v943, 7
        %v945 = vsub.s32 %v789, %v944
        %v946 = vrot.slane %v912, %v945
        %v947 = vlaneseq
        %v948 = vshrl.u32 %v947, 7
        %v949 = vsub.s32 %v794, %v948
        %v950 = vrot.slane %v915, %v949
        %v951 = vsel %vm799, %v950, %v946
        %v952 = vsel %vm828, %v933, %v924
        %v953 = vsel %vm830, %v942, %v952
        %v954 = vsel %vm832, %v951, %v953
        %v956 = vsel %vm835, %v954, 0.0
        %957 = vadd.xlane.f32.xlu0 %v956
        %v958 = vpop.xlane.xlu0 %957
        %v960 = vlaneseq
        %v961 = vshrl.u32 %v960, 7
        %v962 = vsub.s32 0, %v961
        %v963 = vrot.slane %v958, %v962
        %v964 = vlaneseq
        %v965 = vshrl.u32 %v964, 7
        %v966 = vsub.s32 1, %v965
        %v967 = vrot.slane %v958, %v966
        %v968 = vlaneseq
        %v969 = vshrl.u32 %v968, 7
        %v970 = vsub.s32 2, %v969
        %v971 = vrot.slane %v958, %v970
        %v972 = vlaneseq
        %v973 = vshrl.u32 %v972, 7
        %v974 = vsub.s32 3, %v973
        %v975 = vrot.slane %v958, %v974
        %v980 = vrcp.pop %v963
        %v981 = vmul.f32 %v869, %v980
        %v982 = vmul.f32 %v871, %v980
        %v983 = vrcp.pop %v967
        %v984 = vmul.f32 %v873, %v983
        %v985 = vmul.f32 %v875, %v983
        %v986 = vrcp.pop %v971
        %v987 = vmul.f32 %v877, %v986
        %v988 = vmul.f32 %v879, %v986
        %v989 = vrcp.pop %v975
        %v990 = vmul.f32 %v881, %v989
        %v991 = vmul.f32 %v883, %v989
        %v992 = vpack.c.bf16 %v982, %v981
        %v993 = vpack.c.bf16 %v985, %v984
        %v994 = vpack.c.bf16 %v988, %v987
        %v995 = vpack.c.bf16 %v991, %v990
        %v996 = vld [vmem:[#allocation9] sm:$0xf]
        %v997 = vld [vmem:[#allocation9 + $0x4] sm:$0xf]
        %v998 = vld [vmem:[#allocation9 + $0x8] sm:$0xf]
        %v999 = vld [vmem:[#allocation9 + $0xc] sm:$0xf]
        %v1000 = vld [vmem:[#allocation9 + $0x10] sm:$0xf]
        %v1001 = vld [vmem:[#allocation9 + $0x14] sm:$0xf]
        %v1002 = vld [vmem:[#allocation9 + $0x18] sm:$0xf]
        %v1003 = vld [vmem:[#allocation9 + $0x1c] sm:$0xf]
        %v1005 = vunpack.c.l.b16 %v992
        %v1006 = vunpack.c.h.b16 %v992
        %1007 = vset.pattern.permute.xlu0 0
        %1008 = vperm.xlu0 %1007, %v1005
        %v1009 = vpop.permute.xlu0 %1008
        %1010 = vset.pattern.permute.xlu0 0
        %1011 = vperm.xlu0 %1010, %v1006
        %v1012 = vpop.permute.xlu0 %1011
        %v1013 = vlaneseq
        %v1014 = vshrl.u32 %v1013, 7
        %v1015 = vsub.s32 %v789, %v1014
        %v1016 = vrot.slane %v1009, %v1015
        %v1017 = vlaneseq
        %v1018 = vshrl.u32 %v1017, 7
        %v1019 = vsub.s32 %v794, %v1018
        %v1020 = vrot.slane %v1012, %v1019
        %v1021 = vsel %vm799, %v1020, %v1016
        %v1022 = vpack.c.b16 %v1021, %v1021
        %v1025 = vunpack.c.l.b16 %v996
        %v1026 = vunpack.c.l.b16 %v997
        %v1027 = vpack.c.b16 %v1026, %v1025
        %vm1029 = vcmask 130048
        %v1031 = vsel %vm1029, %v1022, 0
        %1033 = vmatprep.subr.bf16.mxu0 0
        %1034 = vmatpush1.bf16.msra.mxu0 0
        %1035 = vmatprep.subr.bf16.mxu0 0
        %1036 = vmatpush1.bf16.msra.mxu0 0
        %1037 = vmatprep.subr.bf16.mxu0 0
        %1038 = vmatpush1.bf16.msra.mxu0 0
        %1039 = vmatprep.subr.bf16.mxu0 0
        %1040 = vmatpush1.bf16.msra.mxu0 0
        %1041 = vmatprep.subr.bf16.mxu0 0
        %1042 = vmatpush1.bf16.msra.mxu0 0
        %1043 = vmatprep.subr.bf16.mxu0 0
        %1044 = vmatpush1.bf16.msra.mxu0 0
        %1045 = vmatprep.subr.bf16.mxu0 0
        %1046 = vmatpush1.bf16.msra.mxu0 0
        %1047 = vmatprep.subr.bf16.mxu0 0
        %1048 = vmatpush1.bf16.msra.mxu0 %v1027
        %1049 = vmatprep.subr.bf16.mxu0 0
        %1050 = vmatpush2.bf16.msra.mxu0 0
        %1051 = vmatprep.subr.bf16.mxu0 0
        %1052 = vmatpush2.bf16.msra.mxu0 0
        %1053 = vmatprep.subr.bf16.mxu0 0
        %1054 = vmatpush2.bf16.msra.mxu0 0
        %1055 = vmatprep.subr.bf16.mxu0 0
        %1056 = vmatpush2.bf16.msra.mxu0 0
        %1057 = vmatprep.subr.bf16.mxu0 0
        %1058 = vmatpush2.bf16.msra.mxu0 0
        %1059 = vmatprep.subr.bf16.mxu0 0
        %1060 = vmatpush2.bf16.msra.mxu0 0
        %1061 = vmatprep.subr.bf16.mxu0 0
        %1062 = vmatpush2.bf16.msra.mxu0 0
        %1063 = vmatprep.subr.bf16.mxu0 0
        %1064 = vmatpush2.bf16.msra.mxu0 0
        %1065 = vmatprep.mubr.bf16.mxu0 0
        %1066 = vmatmul.mubr.bf16.gmra.mxu0 %v1031
        %v1067 = vpop.f32.mrf.mxu0
        %v1068 = vadd.f32 0.0, %v1067
        %v1069 = vpop.f32.mrf.mxu0
        %v1070 = vpop.f32.mrf.mxu0
        %v1071 = vpop.f32.mrf.mxu0
        %1072 = vdwg.mxu0
        %v1074 = vunpack.c.l.b16 %v993
        %v1075 = vunpack.c.h.b16 %v993
        %1076 = vset.pattern.permute.xlu0 0
        %1077 = vperm.xlu0 %1076, %v1074
        %v1078 = vpop.permute.xlu0 %1077
        %1079 = vset.pattern.permute.xlu0 0
        %1080 = vperm.xlu0 %1079, %v1075
        %v1081 = vpop.permute.xlu0 %1080
        %v1082 = vlaneseq
        %v1083 = vshrl.u32 %v1082, 7
        %v1084 = vsub.s32 %v789, %v1083
        %v1085 = vrot.slane %v1078, %v1084
        %v1086 = vlaneseq
        %v1087 = vshrl.u32 %v1086, 7
        %v1088 = vsub.s32 %v794, %v1087
        %v1089 = vrot.slane %v1081, %v1088
        %v1090 = vsel %vm799, %v1089, %v1085
        %v1091 = vpack.c.b16 %v1090, %v1090
        %v1094 = vunpack.c.l.b16 %v998
        %v1095 = vunpack.c.l.b16 %v999
        %v1096 = vpack.c.b16 %v1095, %v1094
        %v1099 = vsel %vm1029, %v1091, 0
        %1101 = vmatprep.subr.bf16.mxu0 0
        %1102 = vmatpush1.bf16.msra.mxu0 0
        %1103 = vmatprep.subr.bf16.mxu0 0
        %1104 = vmatpush1.bf16.msra.mxu0 0
        %1105 = vmatprep.subr.bf16.mxu0 0
        %1106 = vmatpush1.bf16.msra.mxu0 0
        %1107 = vmatprep.subr.bf16.mxu0 0
        %1108 = vmatpush1.bf16.msra.mxu0 0
        %1109 = vmatprep.subr.bf16.mxu0 0
        %1110 = vmatpush1.bf16.msra.mxu0 0
        %1111 = vmatprep.subr.bf16.mxu0 0
        %1112 = vmatpush1.bf16.msra.mxu0 0
        %1113 = vmatprep.subr.bf16.mxu0 0
        %1114 = vmatpush1.bf16.msra.mxu0 0
        %1115 = vmatprep.subr.bf16.mxu0 0
        %1116 = vmatpush1.bf16.msra.mxu0 %v1096
        %1117 = vmatprep.subr.bf16.mxu0 0
        %1118 = vmatpush2.bf16.msra.mxu0 0
        %1119 = vmatprep.subr.bf16.mxu0 0
        %1120 = vmatpush2.bf16.msra.mxu0 0
        %1121 = vmatprep.subr.bf16.mxu0 0
        %1122 = vmatpush2.bf16.msra.mxu0 0
        %1123 = vmatprep.subr.bf16.mxu0 0
        %1124 = vmatpush2.bf16.msra.mxu0 0
        %1125 = vmatprep.subr.bf16.mxu0 0
        %1126 = vmatpush2.bf16.msra.mxu0 0
        %1127 = vmatprep.subr.bf16.mxu0 0
        %1128 = vmatpush2.bf16.msra.mxu0 0
        %1129 = vmatprep.subr.bf16.mxu0 0
        %1130 = vmatpush2.bf16.msra.mxu0 0
        %1131 = vmatprep.subr.bf16.mxu0 0
        %1132 = vmatpush2.bf16.msra.mxu0 0
        %1133 = vmatprep.mubr.bf16.mxu0 0
        %1134 = vmatmul.mubr.bf16.gmra.mxu0 %v1099
        %v1135 = vpop.f32.mrf.mxu0
        %v1136 = vadd.f32 0.0, %v1135
        %v1137 = vpop.f32.mrf.mxu0
        %v1138 = vpop.f32.mrf.mxu0
        %v1139 = vpop.f32.mrf.mxu0
        %1140 = vdwg.mxu0
        %v1142 = vunpack.c.l.b16 %v994
        %v1143 = vunpack.c.h.b16 %v994
        %1144 = vset.pattern.permute.xlu0 0
        %1145 = vperm.xlu0 %1144, %v1142
        %v1146 = vpop.permute.xlu0 %1145
        %1147 = vset.pattern.permute.xlu0 0
        %1148 = vperm.xlu0 %1147, %v1143
        %v1149 = vpop.permute.xlu0 %1148
        %v1150 = vlaneseq
        %v1151 = vshrl.u32 %v1150, 7
        %v1152 = vsub.s32 %v789, %v1151
        %v1153 = vrot.slane %v1146, %v1152
        %v1154 = vlaneseq
        %v1155 = vshrl.u32 %v1154, 7
        %v1156 = vsub.s32 %v794, %v1155
        %v1157 = vrot.slane %v1149, %v1156
        %v1158 = vsel %vm799, %v1157, %v1153
        %v1159 = vpack.c.b16 %v1158, %v1158
        %v1162 = vunpack.c.l.b16 %v1000
        %v1163 = vunpack.c.l.b16 %v1001
        %v1164 = vpack.c.b16 %v1163, %v1162
        %v1167 = vsel %vm1029, %v1159, 0
        %1169 = vmatprep.subr.bf16.mxu0 0
        %1170 = vmatpush1.bf16.msra.mxu0 0
        %1171 = vmatprep.subr.bf16.mxu0 0
        %1172 = vmatpush1.bf16.msra.mxu0 0
        %1173 = vmatprep.subr.bf16.mxu0 0
        %1174 = vmatpush1.bf16.msra.mxu0 0
        %1175 = vmatprep.subr.bf16.mxu0 0
        %1176 = vmatpush1.bf16.msra.mxu0 0
        %1177 = vmatprep.subr.bf16.mxu0 0
        %1178 = vmatpush1.bf16.msra.mxu0 0
        %1179 = vmatprep.subr.bf16.mxu0 0
        %1180 = vmatpush1.bf16.msra.mxu0 0
        %1181 = vmatprep.subr.bf16.mxu0 0
        %1182 = vmatpush1.bf16.msra.mxu0 0
        %1183 = vmatprep.subr.bf16.mxu0 0
        %1184 = vmatpush1.bf16.msra.mxu0 %v1164
        %1185 = vmatprep.subr.bf16.mxu0 0
        %1186 = vmatpush2.bf16.msra.mxu0 0
        %1187 = vmatprep.subr.bf16.mxu0 0
        %1188 = vmatpush2.bf16.msra.mxu0 0
        %1189 = vmatprep.subr.bf16.mxu0 0
        %1190 = vmatpush2.bf16.msra.mxu0 0
        %1191 = vmatprep.subr.bf16.mxu0 0
        %1192 = vmatpush2.bf16.msra.mxu0 0
        %1193 = vmatprep.subr.bf16.mxu0 0
        %1194 = vmatpush2.bf16.msra.mxu0 0
        %1195 = vmatprep.subr.bf16.mxu0 0
        %1196 = vmatpush2.bf16.msra.mxu0 0
        %1197 = vmatprep.subr.bf16.mxu0 0
        %1198 = vmatpush2.bf16.msra.mxu0 0
        %1199 = vmatprep.subr.bf16.mxu0 0
        %1200 = vmatpush2.bf16.msra.mxu0 0
        %1201 = vmatprep.mubr.bf16.mxu0 0
        %1202 = vmatmul.mubr.bf16.gmra.mxu0 %v1167
        %v1203 = vpop.f32.mrf.mxu0
        %v1204 = vadd.f32 0.0, %v1203
        %v1205 = vpop.f32.mrf.mxu0
        %v1206 = vpop.f32.mrf.mxu0
        %v1207 = vpop.f32.mrf.mxu0
        %1208 = vdwg.mxu0
        %v1210 = vunpack.c.l.b16 %v995
        %v1211 = vunpack.c.h.b16 %v995
        %1212 = vset.pattern.permute.xlu0 0
        %1213 = vperm.xlu0 %1212, %v1210
        %v1214 = vpop.permute.xlu0 %1213
        %1215 = vset.pattern.permute.xlu0 0
        %1216 = vperm.xlu0 %1215, %v1211
        %v1217 = vpop.permute.xlu0 %1216
        %v1218 = vlaneseq
        %v1219 = vshrl.u32 %v1218, 7
        %v1220 = vsub.s32 %v789, %v1219
        %v1221 = vrot.slane %v1214, %v1220
        %v1222 = vlaneseq
        %v1223 = vshrl.u32 %v1222, 7
        %v1224 = vsub.s32 %v794, %v1223
        %v1225 = vrot.slane %v1217, %v1224
        %v1226 = vsel %vm799, %v1225, %v1221
        %v1227 = vpack.c.b16 %v1226, %v1226
        %v1230 = vunpack.c.l.b16 %v1002
        %v1231 = vunpack.c.l.b16 %v1003
        %v1232 = vpack.c.b16 %v1231, %v1230
        %v1235 = vsel %vm1029, %v1227, 0
        %1237 = vmatprep.subr.bf16.mxu0 0
        %1238 = vmatpush1.bf16.msra.mxu0 0
        %1239 = vmatprep.subr.bf16.mxu0 0
        %1240 = vmatpush1.bf16.msra.mxu0 0
        %1241 = vmatprep.subr.bf16.mxu0 0
        %1242 = vmatpush1.bf16.msra.mxu0 0
        %1243 = vmatprep.subr.bf16.mxu0 0
        %1244 = vmatpush1.bf16.msra.mxu0 0
        %1245 = vmatprep.subr.bf16.mxu0 0
        %1246 = vmatpush1.bf16.msra.mxu0 0
        %1247 = vmatprep.subr.bf16.mxu0 0
        %1248 = vmatpush1.bf16.msra.mxu0 0
        %1249 = vmatprep.subr.bf16.mxu0 0
        %1250 = vmatpush1.bf16.msra.mxu0 0
        %1251 = vmatprep.subr.bf16.mxu0 0
        %1252 = vmatpush1.bf16.msra.mxu0 %v1232
        %1253 = vmatprep.subr.bf16.mxu0 0
        %1254 = vmatpush2.bf16.msra.mxu0 0
        %1255 = vmatprep.subr.bf16.mxu0 0
        %1256 = vmatpush2.bf16.msra.mxu0 0
        %1257 = vmatprep.subr.bf16.mxu0 0
        %1258 = vmatpush2.bf16.msra.mxu0 0
        %1259 = vmatprep.subr.bf16.mxu0 0
        %1260 = vmatpush2.bf16.msra.mxu0 0
        %1261 = vmatprep.subr.bf16.mxu0 0
        %1262 = vmatpush2.bf16.msra.mxu0 0
        %1263 = vmatprep.subr.bf16.mxu0 0
        %1264 = vmatpush2.bf16.msra.mxu0 0
        %1265 = vmatprep.subr.bf16.mxu0 0
        %1266 = vmatpush2.bf16.msra.mxu0 0
        %1267 = vmatprep.subr.bf16.mxu0 0
        %1268 = vmatpush2.bf16.msra.mxu0 0
        %1269 = vmatprep.mubr.bf16.mxu0 0
        %1270 = vmatmul.mubr.bf16.gmra.mxu0 %v1235
        %v1271 = vpop.f32.mrf.mxu0
        %v1272 = vadd.f32 0.0, %v1271
        %v1273 = vpop.f32.mrf.mxu0
        %v1274 = vpop.f32.mrf.mxu0
        %v1275 = vpop.f32.mrf.mxu0
        %1276 = vdwg.mxu0
        %v1281 = vrot.slane %v1136, 7
        %v1282 = vsel %vm828, %v1281, %v1068
        %v1283 = vrot.slane %v1204, 6
        %v1284 = vsel %vm830, %v1283, %v1282
        %v1285 = vrot.slane %v1272, 5
        %v1286 = vsel %vm832, %v1285, %v1284
        %1287 = vrot.lane.b32.xlu0 %v1286, 32
        %v1288 = vpop.permute.xlu0 %1287
        %v1290 = vmul.f32 %v663, %v1288
        %v1291 = vld [vmem:[%s506] sm:$0x3]
        %v1292 = vpack.c.bf16 %v1290, %v1290
        %1294 = vrot.lane.b32.xlu0 %v590, 64
        %v1295 = vpop.permute.xlu0 %1294
        %v1298 = vsel %vm614, %v1291, %v1292
        %vm1299 = vcmask 523264
        %v1301 = vsel %vm1299, %v1298, %v1295
        %v1302 = vld [vmem:[#allocation18] sm:$0xf]
        %v1303 = vld [vmem:[#allocation18 + $0x4] sm:$0xf]
        %v1304 = vld [vmem:[#allocation18 + $0x8] sm:$0xf]
        %v1305 = vld [vmem:[#allocation18 + $0xc] sm:$0xf]
        %v1306 = vld [vmem:[#allocation18 + $0x10] sm:$0xf]
        %v1307 = vld [vmem:[#allocation18 + $0x14] sm:$0xf]
        %v1308 = vld [vmem:[#allocation18 + $0x18] sm:$0xf]
        %v1309 = vld [vmem:[#allocation18 + $0x1c] sm:$0xf]
        %v1310 = vld [vmem:[#allocation18 + $0x20] sm:$0xf]
        %v1311 = vld [vmem:[#allocation18 + $0x24] sm:$0xf]
        %v1312 = vld [vmem:[#allocation18 + $0x28] sm:$0xf]
        %v1313 = vld [vmem:[#allocation18 + $0x2c] sm:$0xf]
        %v1314 = vld [vmem:[#allocation19] sm:$0x1]
        %v1316 = vlaneseq
        %v1317 = vshrl.u32 %v1316, 7
        %v1318 = vsub.s32 0, %v1317
        %v1319 = vrot.slane %v1314, %v1318
        %v1333 = vunpack.c.l.b16 %v1302
        %v1334 = vunpack.c.l.b16 %v1303
        %v1335 = vunpack.c.l.b16 %v1304
        %v1336 = vunpack.c.l.b16 %v1305
        %v1337 = vunpack.c.l.b16 %v1306
        %v1338 = vunpack.c.l.b16 %v1307
        %v1339 = vunpack.c.l.b16 %v1308
        %v1340 = vunpack.c.l.b16 %v1309
        %v1341 = vunpack.c.l.b16 %v1310
        %v1342 = vunpack.c.l.b16 %v1311
        %v1343 = vunpack.c.l.b16 %v1312
        %v1344 = vunpack.c.l.b16 %v1313
        %v1345 = vpack.c.b16 %v1334, %v1333
        %v1346 = vpack.c.b16 %v1336, %v1335
        %v1347 = vpack.c.b16 %v1338, %v1337
        %v1348 = vpack.c.b16 %v1340, %v1339
        %v1349 = vpack.c.b16 %v1342, %v1341
        %v1350 = vpack.c.b16 %v1344, %v1343
        %vm1357 = vcmask 785408
        %v1358 = vsel %vm1357, %v1301, 0
        %1360 = vmatprep.subr.bf16.mxu0 0
        %1361 = vmatpush1.bf16.msra.mxu0 0
        %1362 = vmatprep.subr.bf16.mxu0 0
        %1363 = vmatpush1.bf16.msra.mxu0 0
        %1364 = vmatprep.subr.bf16.mxu0 0
        %1365 = vmatpush1.bf16.msra.mxu0 %v1350
        %1366 = vmatprep.subr.bf16.mxu0 0
        %1367 = vmatpush1.bf16.msra.mxu0 %v1349
        %1368 = vmatprep.subr.bf16.mxu0 0
        %1369 = vmatpush1.bf16.msra.mxu0 %v1348
        %1370 = vmatprep.subr.bf16.mxu0 0
        %1371 = vmatpush1.bf16.msra.mxu0 %v1347
        %1372 = vmatprep.subr.bf16.mxu0 0
        %1373 = vmatpush1.bf16.msra.mxu0 %v1346
        %1374 = vmatprep.subr.bf16.mxu0 0
        %1375 = vmatpush1.bf16.msra.mxu0 %v1345
        %1376 = vmatprep.subr.bf16.mxu0 0
        %1377 = vmatpush2.bf16.msra.mxu0 0
        %1378 = vmatprep.subr.bf16.mxu0 0
        %1379 = vmatpush2.bf16.msra.mxu0 0
        %1380 = vmatprep.subr.bf16.mxu0 0
        %1381 = vmatpush2.bf16.msra.mxu0 0
        %1382 = vmatprep.subr.bf16.mxu0 0
        %1383 = vmatpush2.bf16.msra.mxu0 0
        %1384 = vmatprep.subr.bf16.mxu0 0
        %1385 = vmatpush2.bf16.msra.mxu0 0
        %1386 = vmatprep.subr.bf16.mxu0 0
        %1387 = vmatpush2.bf16.msra.mxu0 0
        %1388 = vmatprep.subr.bf16.mxu0 0
        %1389 = vmatpush2.bf16.msra.mxu0 0
        %1390 = vmatprep.subr.bf16.mxu0 0
        %1391 = vmatpush2.bf16.msra.mxu0 0
        %1392 = vmatprep.mubr.bf16.mxu0 0
        %1393 = vmatmul.mubr.bf16.gmra.mxu0 %v1358
        %v1394 = vpop.f32.mrf.mxu0
        %v1395 = vadd.f32 %v1319, %v1394
        %v1396 = vpop.f32.mrf.mxu0
        %v1397 = vpop.f32.mrf.mxu0
        %v1398 = vpop.f32.mrf.mxu0
        %1399 = vdwg.mxu0
        %v1400 = vxor.u32 %v1395, 2147483648
        %v1401 = vmul.f32 %v1400, 1.442695
        %v1402 = vpow.pop %v1401
        %v1403 = vadd.f32 %v1402, 1.0
        %v1404 = vrcp.pop %v1403
        %v1405 = vmul.f32 1.0, %v1404
        %v1406 = vtanh.pop %v1395
        %1408 = vrot.lane.b32.xlu0 %v589, 32
        %v1409 = vpop.permute.xlu0 %1408
        %v1411 = vmul.f32 %v1405, %v1409
        %1413 = vrot.lane.b32.xlu0 %v1406, 64
        %v1414 = vpop.permute.xlu0 %1413
        %v1416 = vmul.f32 %v1405, %v1414
        %1418 = vrot.lane.b32.xlu0 %v1416, 32
        %v1419 = vpop.permute.xlu0 %1418
        %v1421 = vadd.f32 %v1411, %v1419
        %v1422 = vtanh.pop %v1421
        %1424 = vrot.lane.b32.xlu0 %v1422, 64
        %v1425 = vpop.permute.xlu0 %1424
        %v1427 = vmul.f32 %v1405, %v1425
        %v1428 = vpack.c.bf16 %v1427, %v1427
        %v1429 = vld [vmem:[%s11] sm:$0xf]
        %v1430 = vld [vmem:[%s11 + $0x4] sm:$0xf]
        %v1431 = vld [vmem:[%s11 + $0x8] sm:$0xf]
        %v1432 = vld [vmem:[%s11 + $0xc] sm:$0xf]
        %v1433 = vld [vmem:[%s12] sm:$0x1]
        %v1435 = vlaneseq
        %v1436 = vshrl.u32 %v1435, 7
        %v1437 = vsub.s32 0, %v1436
        %v1438 = vrot.slane %v1433, %v1437
        %1441 = vrot.lane.b32.xlu0 %v1428, 32
        %v1442 = vpop.permute.xlu0 %1441
        %v1447 = vunpack.c.l.b16 %v1429
        %v1448 = vunpack.c.l.b16 %v1430
        %v1449 = vunpack.c.l.b16 %v1431
        %v1450 = vunpack.c.l.b16 %v1432
        %v1451 = vpack.c.b16 %v1448, %v1447
        %v1452 = vpack.c.b16 %v1450, %v1449
        %v1456 = vsel %vm614, %v1442, 0
        %1458 = vmatprep.subr.bf16.mxu0 0
        %1459 = vmatpush1.bf16.msra.mxu0 0
        %1460 = vmatprep.subr.bf16.mxu0 0
        %1461 = vmatpush1.bf16.msra.mxu0 0
        %1462 = vmatprep.subr.bf16.mxu0 0
        %1463 = vmatpush1.bf16.msra.mxu0 0
        %1464 = vmatprep.subr.bf16.mxu0 0
        %1465 = vmatpush1.bf16.msra.mxu0 0
        %1466 = vmatprep.subr.bf16.mxu0 0
        %1467 = vmatpush1.bf16.msra.mxu0 0
        %1468 = vmatprep.subr.bf16.mxu0 0
        %1469 = vmatpush1.bf16.msra.mxu0 0
        %1470 = vmatprep.subr.bf16.mxu0 0
        %1471 = vmatpush1.bf16.msra.mxu0 %v1452
        %1472 = vmatprep.subr.bf16.mxu0 0
        %1473 = vmatpush1.bf16.msra.mxu0 %v1451
        %1474 = vmatprep.subr.bf16.mxu0 0
        %1475 = vmatpush2.bf16.msra.mxu0 0
        %1476 = vmatprep.subr.bf16.mxu0 0
        %1477 = vmatpush2.bf16.msra.mxu0 0
        %1478 = vmatprep.subr.bf16.mxu0 0
        %1479 = vmatpush2.bf16.msra.mxu0 0
        %1480 = vmatprep.subr.bf16.mxu0 0
        %1481 = vmatpush2.bf16.msra.mxu0 0
        %1482 = vmatprep.subr.bf16.mxu0 0
        %1483 = vmatpush2.bf16.msra.mxu0 0
        %1484 = vmatprep.subr.bf16.mxu0 0
        %1485 = vmatpush2.bf16.msra.mxu0 0
        %1486 = vmatprep.subr.bf16.mxu0 0
        %1487 = vmatpush2.bf16.msra.mxu0 0
        %1488 = vmatprep.subr.bf16.mxu0 0
        %1489 = vmatpush2.bf16.msra.mxu0 0
        %1490 = vmatprep.mubr.bf16.mxu0 0
        %1491 = vmatmul.mubr.bf16.gmra.mxu0 %v1456
        %v1492 = vpop.f32.mrf.mxu0
        %v1493 = vadd.f32 %v1438, %v1492
        %v1494 = vpop.f32.mrf.mxu0
        %v1495 = vpop.f32.mrf.mxu0
        %v1496 = vpop.f32.mrf.mxu0
        %1497 = vdwg.mxu0
        %s1498 = sld [smem:[#allocation5 + %s41]]
        %v1499 = vlaneseq
        %v1500 = vshrl.u32 %v1499, 7
        %v1501 = vstv %s1498
        %vm1502 = vcmp.lt.s32.totalorder %v1500, %v1501
        %v1503 = vsel %vm1502, 1, 0
        %vm1504 = vcmp.eq.s32.totalorder %v1503, 1
        %v1505 = vsel %vm1504, %v1493, 0.0
        %vm1506 = vcmask 519168
        %1507 = vst.msk [vmem:[%s570] sm:$0xf] %vm1506, %v1505
        %1516 = vset.pattern.permute.xlu0 0
        %1517 = vperm.xlu0 %1516, %v981
        %v1518 = vpop.permute.xlu0 %1517
        %1519 = vset.pattern.permute.xlu0 0
        %1520 = vperm.xlu0 %1519, %v982
        %v1521 = vpop.permute.xlu0 %1520
        %1522 = vset.pattern.permute.xlu0 0
        %1523 = vperm.xlu0 %1522, %v984
        %v1524 = vpop.permute.xlu0 %1523
        %1525 = vset.pattern.permute.xlu0 0
        %1526 = vperm.xlu0 %1525, %v985
        %v1527 = vpop.permute.xlu0 %1526
        %1528 = vset.pattern.permute.xlu0 0
        %1529 = vperm.xlu0 %1528, %v987
        %v1530 = vpop.permute.xlu0 %1529
        %1531 = vset.pattern.permute.xlu0 0
        %1532 = vperm.xlu0 %1531, %v988
        %v1533 = vpop.permute.xlu0 %1532
        %1534 = vset.pattern.permute.xlu0 0
        %1535 = vperm.xlu0 %1534, %v990
        %v1536 = vpop.permute.xlu0 %1535
        %1537 = vset.pattern.permute.xlu0 0
        %1538 = vperm.xlu0 %1537, %v991
        %v1539 = vpop.permute.xlu0 %1538
        %v1540 = vlaneseq
        %v1541 = vshrl.u32 %v1540, 7
        %v1542 = vsub.s32 %v789, %v1541
        %v1543 = vrot.slane %v1518, %v1542
        %v1544 = vlaneseq
        %v1545 = vshrl.u32 %v1544, 7
        %v1546 = vsub.s32 %v794, %v1545
        %v1547 = vrot.slane %v1521, %v1546
        %v1548 = vsel %vm799, %v1547, %v1543
        %v1549 = vlaneseq
        %v1550 = vshrl.u32 %v1549, 7
        %v1551 = vsub.s32 %v789, %v1550
        %v1552 = vrot.slane %v1524, %v1551
        %v1553 = vlaneseq
        %v1554 = vshrl.u32 %v1553, 7
        %v1555 = vsub.s32 %v794, %v1554
        %v1556 = vrot.slane %v1527, %v1555
        %v1557 = vsel %vm799, %v1556, %v1552
        %v1558 = vlaneseq
        %v1559 = vshrl.u32 %v1558, 7
        %v1560 = vsub.s32 %v789, %v1559
        %v1561 = vrot.slane %v1530, %v1560
        %v1562 = vlaneseq
        %v1563 = vshrl.u32 %v1562, 7
        %v1564 = vsub.s32 %v794, %v1563
        %v1565 = vrot.slane %v1533, %v1564
        %v1566 = vsel %vm799, %v1565, %v1561
        %v1567 = vlaneseq
        %v1568 = vshrl.u32 %v1567, 7
        %v1569 = vsub.s32 %v789, %v1568
        %v1570 = vrot.slane %v1536, %v1569
        %v1571 = vlaneseq
        %v1572 = vshrl.u32 %v1571, 7
        %v1573 = vsub.s32 %v794, %v1572
        %v1574 = vrot.slane %v1539, %v1573
        %v1575 = vsel %vm799, %v1574, %v1570
        %v1576 = vsel %vm828, %v1557, %v1548
        %v1577 = vsel %vm830, %v1566, %v1576
        %v1578 = vsel %vm832, %v1575, %v1577
        %v1580 = vsel %vm1504, %v1578, 0.0
        %1581 = vst.msk [vmem:[%s577] sm:$0xf] %vm835, %v1580
        %1583 = vrot.lane.b32.xlu0 %v588, 96
        %v1584 = vpop.permute.xlu0 %1583
        %v1586 = vsel %vm1504, %v1427, %v1584
        %1588 = vrot.lane.b32.xlu0 %v1586, 32
        %v1589 = vpop.permute.xlu0 %1588
        %vm1591 = vcmask 257024
        %1592 = vst.msk [vmem:[#allocation2] sm:$0xf] %vm1591, %v1589
        %v1593 = vsel %vm1504, %v1421, %v1409
        %1595 = vrot.lane.b32.xlu0 %v1593, 96
        %v1596 = vpop.permute.xlu0 %1595
        %1598 = vst.msk [vmem:[#allocation3] sm:$0xf] %vm1591, %v1596
        %s1599 = sand.u32 %s306, 1
        %s1600 = scalar_lea.sflag [#allocation8], %s1599
        %s1601 = sand.u32 %s306, 1
        %s1602 = smul.addr %s1601, 4
        %s1603 = scalar_lea.vmem [#allocation21], %s1602
        %s1604 = sand.u32 %s332, 1
        %s1605 = scalar_lea.sflag [#allocation23], %s1604
        %s1606 = sand.u32 %s332, 1
        %s1607 = smul.addr %s1606, 4
        %s1608 = scalar_lea.vmem [#allocation22], %s1607
        // Predicated region
        $region109: #{tpu_custom_call.1} parent=67 // pred_check
          %p1609 = pneg %p316
        $region110: #{tpu_custom_call.1} parent=67 // pred_check_branch
          %1611 = sbr.rel (%p1609) target = $region112
        $region111: #{tpu_custom_call.1} parent=67 // pred_region
          %s1613 = ssub.s32 64, 64
          %1614 = vsyncadd %s1600, %s1613
          %s1615 = smul.addr %s41, 64
          %s1616 = scalar_lea.hbm %s13, %s1615
          %s1618 = sshll.u32 %s1603, 4
          %s1619 = int_to_ptr.vmem [resolvable:$true] %s1618
          %1621 = dma.vmem_to_hbm [thread:$0]  %s1619, 64, %s1616, %s1600
        $region112: #{tpu_custom_call.1} parent=67 // pred_fallthru
          _
        // Predicated region
        $region113: #{tpu_custom_call.1} parent=67 // pred_check
          %p1622 = pneg %p342
        $region114: #{tpu_custom_call.1} parent=67 // pred_check_branch
          %1624 = sbr.rel (%p1622) target = $region116
        $region115: #{tpu_custom_call.1} parent=67 // pred_region
          %s1626 = ssub.s32 64, 64
          %1627 = vsyncadd %s1605, %s1626
          %s1628 = smul.addr %s41, 64
          %s1629 = scalar_lea.hbm %s14, %s1628
          %s1631 = sshll.u32 %s1608, 4
          %s1632 = int_to_ptr.vmem [resolvable:$true] %s1631
          %1634 = dma.vmem_to_hbm [thread:$0]  %s1632, 64, %s1629, %s1605
        $region116: #{tpu_custom_call.1} parent=67 // pred_fallthru
          _
      $region68: #{tpu_custom_call.1} parent=5 // pred_fallthru
        _
      %p1635 = scmp.le.s32.totalorder 2, %s36
      // Predicated region
      $region117: #{tpu_custom_call.1} parent=5 // pred_check
        %p1636 = pneg %p1635
      $region118: #{tpu_custom_call.1} parent=5 // pred_check_branch
        %1638 = sbr.rel (%p1636) target = $region120
      $region119: #{tpu_custom_call.1} parent=5 // pred_region
        %s1639 = ssub.s32 %s36, 2
        // Predicated region
        $region121: #{tpu_custom_call.1} parent=119 // pred_check
          %p1640 = pneg %p322
        $region122: #{tpu_custom_call.1} parent=119 // pred_check_branch
          %1642 = sbr.rel (%p1640) target = $region124
        $region123: #{tpu_custom_call.1} parent=119 // pred_region
          %s1643 = sand.u32 %s307, 1
          %s1644 = scalar_lea.sflag [#allocation8], %s1643
          %s1645 = sand.u32 %s307, 1
          %s1646 = smul.addr %s1645, 4
          %s1647 = scalar_lea.vmem [#allocation21], %s1646
          %1648 = dma.done %s1644, 64
        $region124: #{tpu_custom_call.1} parent=119 // pred_fallthru
          _
        // Predicated region
        $region125: #{tpu_custom_call.1} parent=119 // pred_check
          %p1649 = pneg %p348
        $region126: #{tpu_custom_call.1} parent=119 // pred_check_branch
          %1651 = sbr.rel (%p1649) target = $region128
        $region127: #{tpu_custom_call.1} parent=119 // pred_region
          %s1652 = sand.u32 %s333, 1
          %s1653 = scalar_lea.sflag [#allocation23], %s1652
          %s1654 = sand.u32 %s333, 1
          %s1655 = smul.addr %s1654, 4
          %s1656 = scalar_lea.vmem [#allocation22], %s1655
          %1657 = dma.done %s1653, 64
        $region128: #{tpu_custom_call.1} parent=119 // pred_fallthru
          _
      $region120: #{tpu_custom_call.1} parent=5 // pred_fallthru
        _
    $region6: #{tpu_custom_call.1} parent=1 // loop_footer
      %s40 = sadd.s32 1, %s36
    $region7: #{tpu_custom_call.1} parent=1 // loop_footer_branch
      %35 = sbr.rel target = $region3
    $region8: #{tpu_custom_call.1} parent=1 // loop_exit
      _
    %1658 = vsyncpa [#allocation7], 1
    %s1659 = scalar_lea.sflag [#allocation7], 1
    %1660 = vsyncpa %s1659, 1
    %1661 = vsyncpa [#allocation10], 1
    %1662 = vsyncpa [#allocation14], 1
    %1663 = vsyncpa [#allocation17], 1
    %1664 = vsyncpa [#allocation20], 1
    %1665 = vsyncpa [#allocation8], 1
    %s1666 = scalar_lea.sflag [#allocation8], 1
    %1667 = vsyncpa %s1666, 1
    %1668 = vsyncpa [#allocation23], 1
    %s1669 = scalar_lea.sflag [#allocation23], 1
    %1670 = vsyncpa %s1669, 1

</llo_original>
